<compile_context>
chip_gen: v7x
topology: tpu7x:2x2x1
jax: 0.10.0
libtpu: 0.0.40
codegen_flags: <defaults>
</compile_context>

<pallas_src>
import jax
import jax.numpy as jnp
from jax.experimental import pallas as pl
from jax.experimental.pallas import tpu as pltpu


def _nonlocal_attn_kernel(theta_ref, phiT_ref, g_ref, x_ref, w_ref, shift_ref,
                          z_ref, m_sc, l_sc, acc_sc):
    """Flash attention over precomputed projections + fused W-conv/BN/residual.

    Grid = (batch, query-tile, key-tile); the key axis is the sequential
    ("arbitrary") reduction, batch/query axes are "parallel" (megacore shards on
    v7x).  theta / x / the output block have key-independent index maps, so they
    are DMA'd once per query tile and stay resident across the key loop.
    """
    k = pl.program_id(2)
    nk = pl.num_programs(2)

    @pl.when(k == 0)
    def _init():
        m_sc[...] = jnp.full_like(m_sc, -jnp.inf)
        l_sc[...] = jnp.zeros_like(l_sc)
        acc_sc[...] = jnp.zeros_like(acc_sc)

    th = theta_ref[0]          # (TQ, D) bf16, resident across the key loop
    ph = phiT_ref[0]           # (D, TK) bf16, natural layout — no per-step transpose
    gk = g_ref[0]              # (TK, D) bf16

    # Scores: bf16 operands, f32 accumulation on the MXU.
    s = jnp.dot(th, ph, preferred_element_type=jnp.float32)          # (TQ, TK)

    # Online softmax update (f32 state).
    m_prev = m_sc[...]
    m_new = jnp.maximum(m_prev, jnp.max(s, axis=-1, keepdims=True))
    alpha = jnp.exp(m_prev - m_new)
    p = jnp.exp(s - m_new)
    l_sc[...] = alpha * l_sc[...] + jnp.sum(p, axis=-1, keepdims=True)
    acc_sc[...] = alpha * acc_sc[...] + jnp.dot(p.astype(jnp.bfloat16), gk,
                                                preferred_element_type=jnp.float32)
    m_sc[...] = m_new

    @pl.when(k == nk - 1)
    def _finalize():
        # Normalize, apply 1x1 W-conv (BN scale pre-folded into the weight),
        # add shift (W bias + BN shift) and the residual, write the output tile.
        y = acc_sc[...] * pl.reciprocal(l_sc[...], approx=True)       # (TQ, D) f32
        w_y = jnp.dot(y.astype(jnp.bfloat16), w_ref[...],
                      preferred_element_type=jnp.float32)             # (TQ, C) f32
        z_ref[0] = (w_y + shift_ref[...] + x_ref[0]).astype(z_ref.dtype)


def _pick_tile(n, cap, aligns):
    """Largest divisor of n that is <= cap and a multiple of one of `aligns`
    (tried in order).  Falls back to n itself (a full-dim block is always
    layout-legal) only when n is small enough not to blow VMEM."""
    for align in aligns:
        for t in range(min(cap, n), align - 1, -1):
            if n % t == 0 and t % align == 0:
                return t
    if n <= 4096:
        return n
    raise ValueError(
        f"H*W={n} has no tile aligned to {aligns} and <= {cap}; pad the spatial extent.")


def nonlocal_block_2d(x_nchw, params, *, tq=512, tk=512):
    """Pallas-backed forward. x_nchw: (B, C, H, W) float32, returns same shape."""
    B, C, H, W = x_nchw.shape
    N = H * W
    D = params["theta_w"].shape[1]

    # tk lands on the lane axis of the phi^T block -> needs 128 alignment (or
    # full-N); tq only needs sublane (8) alignment but prefers 128 for the MXU.
    tq = _pick_tile(N, tq, (128, 8))
    tk = _pick_tile(N, tk, (128,))

    # phi path reuses the g-conv weights when `compression` is truthy (module quirk).
    share_phi = bool(params["compression"])
    phi_eff_w = params["g_w"] if share_phi else params["phi_w"]

    # NCHW -> (B, N, C); the residual path stays f32 for an exact skip connection.
    x = jnp.transpose(x_nchw, (0, 2, 3, 1)).reshape(B, N, C).astype(jnp.float32)

    # Hoisted 1x1-conv projections (one XLA matmul each, f32 accumulate), streamed
    # into the kernel as bf16.  phi is pre-transposed to (B, D, N) for a
    # natural-layout score matmul in the kernel.
    hi = jax.lax.Precision.HIGHEST
    theta = jnp.einsum('bnc,cd->bnd', x, params["theta_w"].astype(jnp.float32),
                       precision=hi).astype(jnp.bfloat16)
    g_p = jnp.einsum('bnc,cd->bnd', x, params["g_w"].astype(jnp.float32),
                     precision=hi).astype(jnp.bfloat16)
    if share_phi:
        phi_p = g_p
    else:
        phi_p = jnp.einsum('bnc,cd->bnd', x, phi_eff_w.astype(jnp.float32),
                           precision=hi).astype(jnp.bfloat16)
    phiT = jnp.transpose(phi_p, (0, 2, 1))                            # (B, D, N)

    # Fold eval-mode BatchNorm + W-conv bias: scale goes into the W weight,
    # everything additive into one (1, C) shift vector.
    if params["bn_layer"]:
        inv = 1.0 / jnp.sqrt(params["bn_var"] + 1e-5)
        scale = params["bn_gamma"] * inv
        shift = (params["w_b"] - params["bn_mean"]) * scale + params["bn_beta"]
    else:
        scale = jnp.ones((C,), jnp.float32)
        shift = params["w_b"].astype(jnp.float32)
    w_w = (params["w_w"].astype(jnp.float32) * scale[None, :]).astype(jnp.bfloat16)
    shift = shift.astype(jnp.float32).reshape(1, C)

    grid = (B, N // tq, N // tk)
    const2 = lambda b, q, k: (0, 0)    # small resident weights: full-array blocks

    z = pl.pallas_call(
        _nonlocal_attn_kernel,
        out_shape=jax.ShapeDtypeStruct((B, N, C), jnp.float32),
        grid_spec=pltpu.PrefetchScalarGridSpec(
            num_scalar_prefetch=0,
            grid=grid,
            in_specs=[
                pl.BlockSpec((1, tq, D), lambda b, q, k: (b, q, 0)),   # theta (bf16)
                pl.BlockSpec((1, D, tk), lambda b, q, k: (b, 0, k)),   # phi^T (bf16)
                pl.BlockSpec((1, tk, D), lambda b, q, k: (b, k, 0)),   # g     (bf16)
                pl.BlockSpec((1, tq, C), lambda b, q, k: (b, q, 0)),   # x residual (f32)
                pl.BlockSpec((D, C), const2),                          # W weight (scale folded)
                pl.BlockSpec((1, C), const2),                          # shift (bias + BN)
            ],
            out_specs=pl.BlockSpec((1, tq, C), lambda b, q, k: (b, q, 0)),
            scratch_shapes=[
                pltpu.VMEM((tq, 1), jnp.float32),   # running max
                pltpu.VMEM((tq, 1), jnp.float32),   # running denom
                pltpu.VMEM((tq, D), jnp.float32),   # output accumulator
            ],
        ),
        compiler_params=pltpu.CompilerParams(
            dimension_semantics=("parallel", "parallel", "arbitrary"),
            # Fits v7x's 64 MiB physical VMEM with headroom; ample on v5e/v6e.
            vmem_limit_bytes=48 * 1024 * 1024,
        ),
    )(theta, phiT, g_p, x, w_w, shift)

    return z.reshape(B, H, W, C).transpose(0, 3, 1, 2)


def nonlocal_reference(x_nchw, params):
    """Pure-JAX reference (mirrors the PyTorch forward), for validation."""
    B, C, H, W = x_nchw.shape
    N = H * W
    x = jnp.transpose(x_nchw, (0, 2, 3, 1)).reshape(B, N, C).astype(jnp.float32)
    phi_eff_w = params["g_w"] if params["compression"] else params["phi_w"]
    hi = jax.lax.Precision.HIGHEST
    theta = jnp.einsum('bnc,cd->bnd', x, params["theta_w"], precision=hi)
    phi = jnp.einsum('bnc,cd->bnd', x, phi_eff_w, precision=hi)
    g = jnp.einsum('bnc,cd->bnd', x, params["g_w"], precision=hi)
    f = jnp.einsum('bnd,bmd->bnm', theta, phi, precision=hi)
    attn = jax.nn.softmax(f, axis=-1)
    y = jnp.einsum('bnm,bmd->bnd', attn, g, precision=hi)
    w_y = jnp.einsum('bnd,dc->bnc', y, params["w_w"], precision=hi) + params["w_b"]
    if params["bn_layer"]:
        inv = 1.0 / jnp.sqrt(params["bn_var"] + 1e-5)
        w_y = (w_y - params["bn_mean"]) * inv * params["bn_gamma"] + params["bn_beta"]
    z = w_y + x
    return z.reshape(B, H, W, C).transpose(0, 3, 1, 2)


def init_params(key, in_channels, inter_dim, compression=1, bn_layer=True):
    """Deterministic parameter init mirroring the module's shapes.

    1x1 conv weights (out, in, 1, 1) are stored pre-transposed as (in, out) matrices.
    """
    ks = jax.random.split(key, 5)
    s_in = 1.0 / jnp.sqrt(jnp.float32(in_channels))
    s_d = 1.0 / jnp.sqrt(jnp.float32(inter_dim))
    return {
        "theta_w": jax.random.uniform(ks[0], (in_channels, inter_dim), jnp.float32, -s_in, s_in),
        "phi_w":   jax.random.uniform(ks[1], (in_channels, inter_dim), jnp.float32, -s_in, s_in),
        "g_w":     jax.random.uniform(ks[2], (in_channels, inter_dim), jnp.float32, -s_in, s_in),
        "w_w":     jax.random.uniform(ks[3], (inter_dim, in_channels), jnp.float32, -s_d, s_d),
        "w_b":     jax.random.uniform(ks[4], (in_channels,), jnp.float32, -s_d, s_d),
        # BatchNorm (fresh init, eval mode): gamma=1, beta=0, running mean=0, var=1.
        "bn_gamma": jnp.ones((in_channels,), jnp.float32),
        "bn_beta":  jnp.zeros((in_channels,), jnp.float32),
        "bn_mean":  jnp.zeros((in_channels,), jnp.float32),
        "bn_var":   jnp.ones((in_channels,), jnp.float32),
        "compression": compression,
        "bn_layer": bn_layer,
    }


if __name__ == "__main__":
    key = jax.random.PRNGKey(0)
    kx, kp1, kp2 = jax.random.split(key, 3)

    # _NonLocalBlockND(in_channels=4, dimensionality=2, intermediate_dim=8,
    #                  compression=1, bn_layer=True, add_residual=True)
    B, C, H, W = 2, 4, 16, 16
    inter_dim = 8
    x = jax.random.normal(kx, (B, C, H, W), jnp.float32)

    # Config A: compression truthy (phi aliases g's conv) + BatchNorm (eval mode).
    params_a = init_params(kp1, C, inter_dim, compression=1, bn_layer=True)
    # tq=tk=128 so N=256 exercises the multi-tile online-softmax path (grid 2x2x2).
    z_a = jax.block_until_ready(nonlocal_block_2d(x, params_a, tq=128, tk=128))
    ref_a = nonlocal_reference(x, params_a)
    assert z_a.shape == x.shape, (z_a.shape, x.shape)
    assert bool(jnp.all(jnp.isfinite(z_a)))
    assert bool(jnp.allclose(z_a, ref_a, atol=5e-2, rtol=5e-2)), "mismatch (config A)"

    # Config B: compression falsy (independent phi conv), no BatchNorm.
    params_b = init_params(kp2, C, inter_dim, compression=0, bn_layer=False)
    z_b = jax.block_until_ready(nonlocal_block_2d(x, params_b, tq=128, tk=128))
    ref_b = nonlocal_reference(x, params_b)
    assert bool(jnp.allclose(z_b, ref_b, atol=5e-2, rtol=5e-2)), "mismatch (config B)"

    print("KERNEL_OK")
</pallas_src>

<mosaic_0001>
module attributes {stable_mosaic.version = 11 : i64} {
  func.func @_nonlocal_attn_kernel(%arg0: i32, %arg1: i32, %arg2: i32, %arg3: memref<1x128x8xbf16, #tpu.memory_space<vmem>>, %arg4: memref<1x8x128xbf16, #tpu.memory_space<vmem>>, %arg5: memref<1x128x8xbf16, #tpu.memory_space<vmem>>, %arg6: memref<1x128x4xf32, #tpu.memory_space<vmem>>, %arg7: memref<8x4xbf16, #tpu.memory_space<vmem>>, %arg8: memref<1x4xf32, #tpu.memory_space<vmem>>, %arg9: memref<1x128x4xf32, #tpu.memory_space<vmem>>, %arg10: memref<128x1xf32, #tpu.memory_space<vmem>>, %arg11: memref<128x1xf32, #tpu.memory_space<vmem>>, %arg12: memref<128x8xf32, #tpu.memory_space<vmem>>) attributes {dimension_semantics = [#tpu.dimension_semantics<parallel>, #tpu.dimension_semantics<parallel>, #tpu.dimension_semantics<arbitrary>], iteration_bounds = array<i64: 2, 2, 2>, scalar_prefetch = 0 : i64, scratch_operands = 3 : i64, tpu.core_type = #tpu.core_type<tc>, window_params = [{transform_indices = @transform_0, window_bounds = array<i64: 1, 128, 8>}, {transform_indices = @transform_1, window_bounds = array<i64: 1, 8, 128>}, {transform_indices = @transform_2, window_bounds = array<i64: 1, 128, 8>}, {transform_indices = @transform_3, window_bounds = array<i64: 1, 128, 4>}, {pipeline_mode = #tpu.pipeline_mode<synchronous>, transform_indices = @transform_4, window_bounds = array<i64: 8, 4>}, {pipeline_mode = #tpu.pipeline_mode<synchronous>, transform_indices = @transform_5, window_bounds = array<i64: 1, 4>}, {transform_indices = @transform_6, window_bounds = array<i64: 1, 128, 4>}]} {
    %c0_i32 = arith.constant 0 : i32
    %0 = arith.cmpi eq, %arg2, %c0_i32 : i32
    %1 = arith.extui %0 : i1 to i32
    %c0_i32_0 = arith.constant 0 : i32
    %2 = arith.cmpi ne, %1, %c0_i32_0 : i32
    scf.if %2 {
      %cst_25 = arith.constant 0xFF800000 : f32
      %36 = vector.broadcast %cst_25 : f32 to vector<128x1xf32>
      %c0_26 = arith.constant 0 : index
      %c0_27 = arith.constant 0 : index
      %37 = vector.load %arg10[%c0_26, %c0_27] : memref<128x1xf32, #tpu.memory_space<vmem>>, vector<128x1xf32>
      tpu.vector_store %arg10[%c0_26, %c0_27], %36 {strides = array<i32>} : memref<128x1xf32, #tpu.memory_space<vmem>>, vector<128x1xf32>,
      %cst_28 = arith.constant 0.000000e+00 : f32
      %38 = vector.broadcast %cst_28 : f32 to vector<128x1xf32>
      %c0_29 = arith.constant 0 : index
      %c0_30 = arith.constant 0 : index
      %39 = vector.load %arg11[%c0_29, %c0_30] : memref<128x1xf32, #tpu.memory_space<vmem>>, vector<128x1xf32>
      tpu.vector_store %arg11[%c0_29, %c0_30], %38 {strides = array<i32>} : memref<128x1xf32, #tpu.memory_space<vmem>>, vector<128x1xf32>,
      %cst_31 = arith.constant 0.000000e+00 : f32
      %40 = vector.broadcast %cst_31 : f32 to vector<128x8xf32>
      %c0_32 = arith.constant 0 : index
      %c0_33 = arith.constant 0 : index
      %41 = vector.load %arg12[%c0_32, %c0_33] : memref<128x8xf32, #tpu.memory_space<vmem>>, vector<128x8xf32>
      tpu.vector_store %arg12[%c0_32, %c0_33], %40 {strides = array<i32>} : memref<128x8xf32, #tpu.memory_space<vmem>>, vector<128x8xf32>,
    } else {
    }
    %c0 = arith.constant 0 : index
    %c0_1 = arith.constant 0 : index
    %c0_2 = arith.constant 0 : index
    %3 = vector.load %arg3[%c0, %c0_1, %c0_2] : memref<1x128x8xbf16, #tpu.memory_space<vmem>>, vector<1x128x8xbf16>
    %4 = vector.shape_cast %3 : vector<1x128x8xbf16> to vector<128x8xbf16>
    %c0_3 = arith.constant 0 : index
    %c0_4 = arith.constant 0 : index
    %c0_5 = arith.constant 0 : index
    %5 = vector.load %arg4[%c0_3, %c0_4, %c0_5] : memref<1x8x128xbf16, #tpu.memory_space<vmem>>, vector<1x8x128xbf16>
    %6 = vector.shape_cast %5 : vector<1x8x128xbf16> to vector<8x128xbf16>
    %c0_6 = arith.constant 0 : index
    %c0_7 = arith.constant 0 : index
    %c0_8 = arith.constant 0 : index
    %7 = vector.load %arg5[%c0_6, %c0_7, %c0_8] : memref<1x128x8xbf16, #tpu.memory_space<vmem>>, vector<1x128x8xbf16>
    %8 = vector.shape_cast %7 : vector<1x128x8xbf16> to vector<128x8xbf16>
    %cst = arith.constant dense<0.000000e+00> : vector<128x128xf32>
    %9 = tpu.matmul %4, %6, %cst {dimension_numbers = #tpu.dot_dimension_numbers<[1], [0], [0], [1], [0, 0, 1, 1], [], []>} : vector<128x8xbf16>, vector<8x128xbf16>, vector<128x128xf32> -> vector<128x128xf32>
    %c0_9 = arith.constant 0 : index
    %c0_10 = arith.constant 0 : index
    %10 = vector.load %arg10[%c0_9, %c0_10] : memref<128x1xf32, #tpu.memory_space<vmem>>, vector<128x1xf32>
    %cst_11 = arith.constant dense<0xFF800000> : vector<128xf32>
    %11 = vector.multi_reduction <maximumf>, %9, %cst_11 [1] : vector<128x128xf32> to vector<128xf32>
    %12 = vector.shape_cast %11 : vector<128xf32> to vector<128x1xf32>
    %13 = arith.maximumf %10, %12 : vector<128x1xf32>
    %14 = arith.subf %10, %13 : vector<128x1xf32>
    %15 = math.exp %14 : vector<128x1xf32>
    %16 = vector.broadcast %13 : vector<128x1xf32> to vector<128x128xf32>
    %17 = arith.subf %9, %16 : vector<128x128xf32>
    %18 = math.exp %17 : vector<128x128xf32>
    %c0_12 = arith.constant 0 : index
    %c0_13 = arith.constant 0 : index
    %19 = vector.load %arg11[%c0_12, %c0_13] : memref<128x1xf32, #tpu.memory_space<vmem>>, vector<128x1xf32>
    %20 = arith.mulf %15, %19 : vector<128x1xf32>
    %cst_14 = arith.constant dense<0.000000e+00> : vector<128xf32>
    %21 = vector.multi_reduction <add>, %18, %cst_14 [1] : vector<128x128xf32> to vector<128xf32>
    %22 = vector.shape_cast %21 : vector<128xf32> to vector<128x1xf32>
    %23 = arith.addf %20, %22 : vector<128x1xf32>
    %c0_15 = arith.constant 0 : index
    %c0_16 = arith.constant 0 : index
    %24 = vector.load %arg11[%c0_15, %c0_16] : memref<128x1xf32, #tpu.memory_space<vmem>>, vector<128x1xf32>
    tpu.vector_store %arg11[%c0_15, %c0_16], %23 {strides = array<i32>} : memref<128x1xf32, #tpu.memory_space<vmem>>, vector<128x1xf32>,
    %c0_17 = arith.constant 0 : index
    %c0_18 = arith.constant 0 : index
    %25 = vector.load %arg12[%c0_17, %c0_18] : memref<128x8xf32, #tpu.memory_space<vmem>>, vector<128x8xf32>
    %26 = vector.broadcast %15 : vector<128x1xf32> to vector<128x8xf32>
    %27 = arith.mulf %26, %25 : vector<128x8xf32>
    %28 = arith.truncf %18 : vector<128x128xf32> to vector<128x128xbf16>
    %cst_19 = arith.constant dense<0.000000e+00> : vector<128x8xf32>
    %29 = tpu.matmul %28, %8, %cst_19 {dimension_numbers = #tpu.dot_dimension_numbers<[1], [0], [0], [1], [0, 0, 1, 1], [], []>} : vector<128x128xbf16>, vector<128x8xbf16>, vector<128x8xf32> -> vector<128x8xf32>
    %30 = arith.addf %27, %29 : vector<128x8xf32>
    %c0_20 = arith.constant 0 : index
    %c0_21 = arith.constant 0 : index
    %31 = vector.load %arg12[%c0_20, %c0_21] : memref<128x8xf32, #tpu.memory_space<vmem>>, vector<128x8xf32>
    tpu.vector_store %arg12[%c0_20, %c0_21], %30 {strides = array<i32>} : memref<128x8xf32, #tpu.memory_space<vmem>>, vector<128x8xf32>,
    %c0_22 = arith.constant 0 : index
    %c0_23 = arith.constant 0 : index
    %32 = vector.load %arg10[%c0_22, %c0_23] : memref<128x1xf32, #tpu.memory_space<vmem>>, vector<128x1xf32>
    tpu.vector_store %arg10[%c0_22, %c0_23], %13 {strides = array<i32>} : memref<128x1xf32, #tpu.memory_space<vmem>>, vector<128x1xf32>,
    %c1_i32 = arith.constant 1 : i32
    %33 = arith.cmpi eq, %arg2, %c1_i32 : i32
    %34 = arith.extui %33 : i1 to i32
    %c0_i32_24 = arith.constant 0 : i32
    %35 = arith.cmpi ne, %34, %c0_i32_24 : i32
    scf.if %35 {
      %c0_25 = arith.constant 0 : index
      %c0_26 = arith.constant 0 : index
      %36 = vector.load %arg12[%c0_25, %c0_26] : memref<128x8xf32, #tpu.memory_space<vmem>>, vector<128x8xf32>
      %c0_27 = arith.constant 0 : index
      %c0_28 = arith.constant 0 : index
      %37 = vector.load %arg11[%c0_27, %c0_28] : memref<128x1xf32, #tpu.memory_space<vmem>>, vector<128x1xf32>
      %38 = tpu.reciprocal %37 {approx = true} : vector<128x1xf32> -> vector<128x1xf32>
      %39 = vector.broadcast %38 : vector<128x1xf32> to vector<128x8xf32>
      %40 = arith.mulf %36, %39 : vector<128x8xf32>
      %41 = arith.truncf %40 : vector<128x8xf32> to vector<128x8xbf16>
      %c0_29 = arith.constant 0 : index
      %c0_30 = arith.constant 0 : index
      %42 = vector.load %arg7[%c0_29, %c0_30] : memref<8x4xbf16, #tpu.memory_space<vmem>>, vector<8x4xbf16>
      %cst_31 = arith.constant dense<0.000000e+00> : vector<128x4xf32>
      %43 = tpu.matmul %41, %42, %cst_31 {dimension_numbers = #tpu.dot_dimension_numbers<[1], [0], [0], [1], [0, 0, 1, 1], [], []>} : vector<128x8xbf16>, vector<8x4xbf16>, vector<128x4xf32> -> vector<128x4xf32>
      %c0_32 = arith.constant 0 : index
      %c0_33 = arith.constant 0 : index
      %44 = vector.load %arg8[%c0_32, %c0_33] : memref<1x4xf32, #tpu.memory_space<vmem>>, vector<1x4xf32>
      %45 = vector.broadcast %44 : vector<1x4xf32> to vector<128x4xf32>
      %46 = arith.addf %43, %45 : vector<128x4xf32>
      %c0_34 = arith.constant 0 : index
      %c0_35 = arith.constant 0 : index
      %c0_36 = arith.constant 0 : index
      %47 = vector.load %arg6[%c0_34, %c0_35, %c0_36] : memref<1x128x4xf32, #tpu.memory_space<vmem>>, vector<1x128x4xf32>
      %48 = vector.shape_cast %47 : vector<1x128x4xf32> to vector<128x4xf32>
      %49 = arith.addf %46, %48 : vector<128x4xf32>
      %c0_37 = arith.constant 0 : index
      %c0_38 = arith.constant 0 : index
      %c0_39 = arith.constant 0 : index
      %50 = vector.load %arg9[%c0_37, %c0_38, %c0_39] : memref<1x128x4xf32, #tpu.memory_space<vmem>>, vector<1x128x4xf32>
      %51 = vector.shape_cast %50 : vector<1x128x4xf32> to vector<128x4xf32>
      %52 = vector.shape_cast %49 : vector<128x4xf32> to vector<1x128x4xf32>
      tpu.vector_store %arg9[%c0_37, %c0_38, %c0_39], %52 {strides = array<i32>} : memref<1x128x4xf32, #tpu.memory_space<vmem>>, vector<1x128x4xf32>,
    } else {
    }
    return
  }
  func.func @transform_0(%arg0: i32, %arg1: i32, %arg2: i32) -> (i32, i32, i32) {
    %c0_i32 = arith.constant 0 : i32
    %c0_i32_0 = arith.constant 0 : i32
    return %arg0, %arg1, %c0_i32 : i32, i32, i32
  }
  func.func @transform_1(%arg0: i32, %arg1: i32, %arg2: i32) -> (i32, i32, i32) {
    %c0_i32 = arith.constant 0 : i32
    %c0_i32_0 = arith.constant 0 : i32
    return %arg0, %c0_i32, %arg2 : i32, i32, i32
  }
  func.func @transform_2(%arg0: i32, %arg1: i32, %arg2: i32) -> (i32, i32, i32) {
    %c0_i32 = arith.constant 0 : i32
    %c0_i32_0 = arith.constant 0 : i32
    return %arg0, %arg2, %c0_i32 : i32, i32, i32
  }
  func.func @transform_3(%arg0: i32, %arg1: i32, %arg2: i32) -> (i32, i32, i32) {
    %c0_i32 = arith.constant 0 : i32
    %c0_i32_0 = arith.constant 0 : i32
    return %arg0, %arg1, %c0_i32 : i32, i32, i32
  }
  func.func @transform_4(%arg0: i32, %arg1: i32, %arg2: i32) -> (i32, i32) {
    %c0_i32 = arith.constant 0 : i32
    %c0_i32_0 = arith.constant 0 : i32
    %c0_i32_1 = arith.constant 0 : i32
    return %c0_i32, %c0_i32_0 : i32, i32
  }
  func.func @transform_5(%arg0: i32, %arg1: i32, %arg2: i32) -> (i32, i32) {
    %c0_i32 = arith.constant 0 : i32
    %c0_i32_0 = arith.constant 0 : i32
    %c0_i32_1 = arith.constant 0 : i32
    return %c0_i32, %c0_i32_0 : i32, i32
  }
  func.func @transform_6(%arg0: i32, %arg1: i32, %arg2: i32) -> (i32, i32, i32) {
    %c0_i32 = arith.constant 0 : i32
    %c0_i32_0 = arith.constant 0 : i32
    return %arg0, %arg1, %c0_i32 : i32, i32, i32
  }
}

</mosaic_0001>

<llo_original>
// kernel: tpu_custom_call.1
$region0: #{tpu_custom_call.1}
  #allocation0 [shape = 'u32[]', space=smem, size = 0x4, offset = 0x4, fixed_abs, tag = 'smem constant byte address 0x4 - core index']
  #allocation1 [shape = 'u32[144,128]{1,0:T(1,128)}', space=vmem, size = 0x12000, scoped, tag = 'internal scratch']
  #allocation2 [shape = 'f32[128,1]{1,0:T(8,128)}', space=vmem, size = 0x10000, scoped, tag = 'scratch operand']
  #allocation3 [shape = 'f32[128,1]{1,0:T(8,128)}', space=vmem, size = 0x10000, scoped, tag = 'scratch operand']
  #allocation4 [shape = 'f32[128,8]{1,0:T(8,128)}', space=vmem, size = 0x10000, scoped, tag = 'scratch operand']
  %s0 = inlined_call_operand.vmem [shape: bf16[2,256,8], index: 0, kind: input, shape index: {}]
  %s1 = inlined_call_operand.vmem [shape: bf16[2,8,256], index: 1, kind: input, shape index: {}]
  %s2 = inlined_call_operand.vmem [shape: bf16[2,256,8], index: 2, kind: input, shape index: {}]
  %s3 = inlined_call_operand.vmem [shape: f32[2,256,4], index: 3, kind: input, shape index: {}]
  %s4 = inlined_call_operand.vmem [shape: bf16[8,4], index: 4, kind: input, shape index: {}]
  %s5 = inlined_call_operand.vmem [shape: f32[1,4], index: 5, kind: input, shape index: {}]
  %s6 = inlined_call_operand.vmem [shape: f32[2,256,4], index: 6, kind: output, shape index: {}]
  %s7 = sld [smem:[#allocation0]]
  $region65: #{tpu_custom_call.1} parent=0
    _
  %s9 = ssub.s32 1, %s7
  %s10 = scalar_select 0, %s9, %s7
  loop: start=0, step=1, limit=10
  $region2: #{tpu_custom_call.1} parent=0 // loop_pre_header
    _
  $region3: #{tpu_custom_call.1} parent=0 // loop_header
    %s12 = sphi 0, %s16
    %p13 = scmp.ge.s32.totalorder %s12, 10
    %s19 = sphi 0, %s38
    %s20 = sphi 0, %s34
    %s21 = sphi 0, %s30
    %s22 = sphi 0, %s19
    %s23 = sphi 0, %s20
    %s24 = sphi 0, %s21
    %s25 = sphi 0, %s22
    %s26 = sphi 0, %s23
    %s27 = sphi 0, %s24
    %s43 = sphi 0, %s45
    %s46 = sphi 0, %s43
    %s47 = sphi 0, %s46
    %s63 = sphi 0, %s47
    %s71 = sphi 0, %s73
    %s74 = sphi 0, %s71
    %s75 = sphi 0, %s74
    %s91 = sphi 0, %s75
    %s99 = sphi 0, %s101
    %s102 = sphi 0, %s99
    %s103 = sphi 0, %s102
    %s119 = sphi 0, %s103
    %s127 = sphi 0, %s129
    %s130 = sphi 0, %s127
    %s131 = sphi 0, %s130
    %s147 = sphi 0, %s131
    %s151 = sphi 0, %s151
    %s153 = sphi 0, %s151
    %s154 = sphi 0, %s153
    %s168 = sphi 0, %s154
    %s172 = sphi 0, %s172
    %s174 = sphi 0, %s172
    %s175 = sphi 0, %s174
    %s189 = sphi 0, %s175
    %s197 = sphi 0, %s199
    %s200 = sphi 0, %s197
    %s201 = sphi 0, %s200
    %s217 = sphi 0, %s201
  $region4: #{tpu_custom_call.1} parent=0 // loop_header_branch
    %15 = sbr.rel (%p13) target = $region8
  $region5: #{tpu_custom_call.1} parent=0 // loop_body
    %s17 = ssub.s32 %s12, 1
    %s18 = ssub.s32 %s12, 2
    %s28 = sadd.s32 1, %s21
    %p29 = scmp.ge.s32.totalorder %s28, 2
    %s30 = scalar_select %p29, 0, %s28
    %s31 = sadd.s32 1, %s20
    %s32 = scalar_select %p29, %s31, %s20
    %p33 = scmp.ge.s32.totalorder %s32, 2
    %s34 = scalar_select %p33, 0, %s32
    %s35 = sadd.s32 1, %s19
    %s36 = scalar_select %p33, %s35, %s19
    %p37 = scmp.ge.s32.totalorder %s36, 2
    %s38 = scalar_select %p37, 0, %s36
    %s39 = ssub.s32 %s19, %s38
    %s40 = ssub.s32 %s20, %s34
    %s41 = sor.u32 %s39, %s40
    %p42 = scmp.eq.s32.totalorder %s41, 0
    %s44 = sadd.s32 %s43, 1
    %s45 = scalar_select %p42, %s43, %s44
    %p48 = pneg %p42
    %p49 = scmp.eq.s32.totalorder %s12, 7
    %p50 = por %p48, %p49
    %p51 = scmp.ne.s32.totalorder %s43, %s46
    %p52 = scmp.eq.s32.totalorder %s12, 0
    %p53 = por %p51, %p52
    %p54 = scmp.ne.s32.totalorder %s43, %s46
    %p55 = scmp.eq.s32.totalorder %s17, 7
    %p56 = por %p54, %p55
    %p57 = scmp.ne.s32.totalorder %s46, %s47
    %p58 = scmp.eq.s32.totalorder %s17, 0
    %p59 = por %p57, %p58
    %p60 = scmp.ne.s32.totalorder %s46, %s47
    %p61 = scmp.eq.s32.totalorder %s18, 7
    %p62 = por %p60, %p61
    %p64 = scmp.ne.s32.totalorder %s47, %s63
    %p65 = scmp.eq.s32.totalorder %s18, 0
    %p66 = por %p64, %p65
    %s67 = ssub.s32 %s19, %s38
    %s68 = ssub.s32 %s21, %s30
    %s69 = sor.u32 %s67, %s68
    %p70 = scmp.eq.s32.totalorder %s69, 0
    %s72 = sadd.s32 %s71, 1
    %s73 = scalar_select %p70, %s71, %s72
    %p76 = pneg %p70
    %p77 = scmp.eq.s32.totalorder %s12, 7
    %p78 = por %p76, %p77
    %p79 = scmp.ne.s32.totalorder %s71, %s74
    %p80 = scmp.eq.s32.totalorder %s12, 0
    %p81 = por %p79, %p80
    %p82 = scmp.ne.s32.totalorder %s71, %s74
    %p83 = scmp.eq.s32.totalorder %s17, 7
    %p84 = por %p82, %p83
    %p85 = scmp.ne.s32.totalorder %s74, %s75
    %p86 = scmp.eq.s32.totalorder %s17, 0
    %p87 = por %p85, %p86
    %p88 = scmp.ne.s32.totalorder %s74, %s75
    %p89 = scmp.eq.s32.totalorder %s18, 7
    %p90 = por %p88, %p89
    %p92 = scmp.ne.s32.totalorder %s75, %s91
    %p93 = scmp.eq.s32.totalorder %s18, 0
    %p94 = por %p92, %p93
    %s95 = ssub.s32 %s19, %s38
    %s96 = ssub.s32 %s21, %s30
    %s97 = sor.u32 %s95, %s96
    %p98 = scmp.eq.s32.totalorder %s97, 0
    %s100 = sadd.s32 %s99, 1
    %s101 = scalar_select %p98, %s99, %s100
    %p104 = pneg %p98
    %p105 = scmp.eq.s32.totalorder %s12, 7
    %p106 = por %p104, %p105
    %p107 = scmp.ne.s32.totalorder %s99, %s102
    %p108 = scmp.eq.s32.totalorder %s12, 0
    %p109 = por %p107, %p108
    %p110 = scmp.ne.s32.totalorder %s99, %s102
    %p111 = scmp.eq.s32.totalorder %s17, 7
    %p112 = por %p110, %p111
    %p113 = scmp.ne.s32.totalorder %s102, %s103
    %p114 = scmp.eq.s32.totalorder %s17, 0
    %p115 = por %p113, %p114
    %p116 = scmp.ne.s32.totalorder %s102, %s103
    %p117 = scmp.eq.s32.totalorder %s18, 7
    %p118 = por %p116, %p117
    %p120 = scmp.ne.s32.totalorder %s103, %s119
    %p121 = scmp.eq.s32.totalorder %s18, 0
    %p122 = por %p120, %p121
    %s123 = ssub.s32 %s19, %s38
    %s124 = ssub.s32 %s20, %s34
    %s125 = sor.u32 %s123, %s124
    %p126 = scmp.eq.s32.totalorder %s125, 0
    %s128 = sadd.s32 %s127, 1
    %s129 = scalar_select %p126, %s127, %s128
    %p132 = pneg %p126
    %p133 = scmp.eq.s32.totalorder %s12, 7
    %p134 = por %p132, %p133
    %p135 = scmp.ne.s32.totalorder %s127, %s130
    %p136 = scmp.eq.s32.totalorder %s12, 0
    %p137 = por %p135, %p136
    %p138 = scmp.ne.s32.totalorder %s127, %s130
    %p139 = scmp.eq.s32.totalorder %s17, 7
    %p140 = por %p138, %p139
    %p141 = scmp.ne.s32.totalorder %s130, %s131
    %p142 = scmp.eq.s32.totalorder %s17, 0
    %p143 = por %p141, %p142
    %p144 = scmp.ne.s32.totalorder %s130, %s131
    %p145 = scmp.eq.s32.totalorder %s18, 7
    %p146 = por %p144, %p145
    %p148 = scmp.ne.s32.totalorder %s131, %s147
    %p149 = scmp.eq.s32.totalorder %s18, 0
    %p150 = por %p148, %p149
    %s152 = sadd.s32 %s151, 1
    %p155 = scmp.eq.s32.totalorder %s12, 7
    %p156 = scmp.ne.s32.totalorder %s151, %s153
    %p157 = scmp.eq.s32.totalorder %s12, 0
    %p158 = por %p156, %p157
    %p159 = scmp.ne.s32.totalorder %s151, %s153
    %p160 = scmp.eq.s32.totalorder %s17, 7
    %p161 = por %p159, %p160
    %p162 = scmp.ne.s32.totalorder %s153, %s154
    %p163 = scmp.eq.s32.totalorder %s17, 0
    %p164 = por %p162, %p163
    %p165 = scmp.ne.s32.totalorder %s153, %s154
    %p166 = scmp.eq.s32.totalorder %s18, 7
    %p167 = por %p165, %p166
    %p169 = scmp.ne.s32.totalorder %s154, %s168
    %p170 = scmp.eq.s32.totalorder %s18, 0
    %p171 = por %p169, %p170
    %s173 = sadd.s32 %s172, 1
    %p176 = scmp.eq.s32.totalorder %s12, 7
    %p177 = scmp.ne.s32.totalorder %s172, %s174
    %p178 = scmp.eq.s32.totalorder %s12, 0
    %p179 = por %p177, %p178
    %p180 = scmp.ne.s32.totalorder %s172, %s174
    %p181 = scmp.eq.s32.totalorder %s17, 7
    %p182 = por %p180, %p181
    %p183 = scmp.ne.s32.totalorder %s174, %s175
    %p184 = scmp.eq.s32.totalorder %s17, 0
    %p185 = por %p183, %p184
    %p186 = scmp.ne.s32.totalorder %s174, %s175
    %p187 = scmp.eq.s32.totalorder %s18, 7
    %p188 = por %p186, %p187
    %p190 = scmp.ne.s32.totalorder %s175, %s189
    %p191 = scmp.eq.s32.totalorder %s18, 0
    %p192 = por %p190, %p191
    %s193 = ssub.s32 %s19, %s38
    %s194 = ssub.s32 %s20, %s34
    %s195 = sor.u32 %s193, %s194
    %p196 = scmp.eq.s32.totalorder %s195, 0
    %s198 = sadd.s32 %s197, 1
    %s199 = scalar_select %p196, %s197, %s198
    %p202 = pneg %p196
    %p203 = scmp.eq.s32.totalorder %s12, 7
    %p204 = por %p202, %p203
    %p205 = scmp.ne.s32.totalorder %s197, %s200
    %p206 = scmp.eq.s32.totalorder %s12, 0
    %p207 = por %p205, %p206
    %p208 = scmp.ne.s32.totalorder %s197, %s200
    %p209 = scmp.eq.s32.totalorder %s17, 7
    %p210 = por %p208, %p209
    %p211 = scmp.ne.s32.totalorder %s200, %s201
    %p212 = scmp.eq.s32.totalorder %s17, 0
    %p213 = por %p211, %p212
    %p214 = scmp.ne.s32.totalorder %s200, %s201
    %p215 = scmp.eq.s32.totalorder %s18, 7
    %p216 = por %p214, %p215
    %p218 = scmp.ne.s32.totalorder %s201, %s217
    %p219 = scmp.eq.s32.totalorder %s18, 0
    %p220 = por %p218, %p219
    %p221 = scmp.le.s32.totalorder 1, %s12
    %p222 = scmp.lt.s32.totalorder %s12, 9
    %p223 = pnand %p221, %p222
    %p224 = pneg %p223
    // Predicated region
    $region9: #{tpu_custom_call.1} parent=5 // pred_check
      _
    $region10: #{tpu_custom_call.1} parent=5 // pred_check_branch
      %226 = sbr.rel (%p223) target = $region12
    $region11: #{tpu_custom_call.1} parent=5 // pred_region
      %s227 = ssub.s32 %s12, 1
      // Predicated region
      $region13: #{tpu_custom_call.1} parent=11 // pred_check
        %p228 = pneg %p164
      $region14: #{tpu_custom_call.1} parent=11 // pred_check_branch
        %230 = sbr.rel (%p228) target = $region16
      $region15: #{tpu_custom_call.1} parent=11 // pred_region
        _
      $region16: #{tpu_custom_call.1} parent=11 // pred_fallthru
        _
      // Predicated region
      $region17: #{tpu_custom_call.1} parent=11 // pred_check
        %p231 = pneg %p185
      $region18: #{tpu_custom_call.1} parent=11 // pred_check_branch
        %233 = sbr.rel (%p231) target = $region20
      $region19: #{tpu_custom_call.1} parent=11 // pred_region
        _
      $region20: #{tpu_custom_call.1} parent=11 // pred_fallthru
        _
    $region12: #{tpu_custom_call.1} parent=5 // pred_fallthru
      _
    %p234 = scmp.lt.s32.totalorder %s12, 8
    // Predicated region
    $region21: #{tpu_custom_call.1} parent=5 // pred_check
      %p235 = pneg %p234
    $region22: #{tpu_custom_call.1} parent=5 // pred_check_branch
      %237 = sbr.rel (%p235) target = $region24
    $region23: #{tpu_custom_call.1} parent=5 // pred_region
      // Predicated region
      $region25: #{tpu_custom_call.1} parent=23 // pred_check
        %p238 = pneg %p53
      $region26: #{tpu_custom_call.1} parent=23 // pred_check_branch
        %240 = sbr.rel (%p238) target = $region28
      $region27: #{tpu_custom_call.1} parent=23 // pred_region
        %s241 = smul.u32 16, %s20
        %p242 = scmp.lt.s32.totalorder %s19, 1
        %s243 = scalar_select %p242, %s19, 1
        %p244 = scmp.lt.s32.totalorder %s241, 31
        %s245 = scalar_select %p244, %s241, 31
        %s246 = smul.addr %s243, 32
        %s247 = sadd.s32 %s245, %s246
        %s248 = smul.addr %s247, 4
        %s249 = scalar_lea.vmem %s0, %s248
        %s250 = smul.u32 16, %s20
      $region28: #{tpu_custom_call.1} parent=23 // pred_fallthru
        _
      // Predicated region
      $region29: #{tpu_custom_call.1} parent=23 // pred_check
        %p251 = pneg %p81
      $region30: #{tpu_custom_call.1} parent=23 // pred_check_branch
        %253 = sbr.rel (%p251) target = $region32
      $region31: #{tpu_custom_call.1} parent=23 // pred_region
        %p254 = scmp.lt.s32.totalorder %s19, 1
        %s255 = scalar_select %p254, %s19, 1
        %p256 = scmp.lt.s32.totalorder %s21, 1
        %s257 = scalar_select %p256, %s21, 1
        %s258 = smul.addr %s255, 2
        %s259 = sadd.s32 %s257, %s258
        %s260 = smul.addr %s259, 4
        %s261 = scalar_lea.vmem %s1, %s260
      $region32: #{tpu_custom_call.1} parent=23 // pred_fallthru
        _
      // Predicated region
      $region33: #{tpu_custom_call.1} parent=23 // pred_check
        %p262 = pneg %p109
      $region34: #{tpu_custom_call.1} parent=23 // pred_check_branch
        %264 = sbr.rel (%p262) target = $region36
      $region35: #{tpu_custom_call.1} parent=23 // pred_region
        %s265 = smul.u32 16, %s21
        %p266 = scmp.lt.s32.totalorder %s19, 1
        %s267 = scalar_select %p266, %s19, 1
        %p268 = scmp.lt.s32.totalorder %s265, 31
        %s269 = scalar_select %p268, %s265, 31
        %s270 = smul.addr %s267, 32
        %s271 = sadd.s32 %s269, %s270
        %s272 = smul.addr %s271, 4
        %s273 = scalar_lea.vmem %s2, %s272
        %s274 = smul.u32 16, %s21
      $region36: #{tpu_custom_call.1} parent=23 // pred_fallthru
        _
      // Predicated region
      $region37: #{tpu_custom_call.1} parent=23 // pred_check
        %p275 = pneg %p137
      $region38: #{tpu_custom_call.1} parent=23 // pred_check_branch
        %277 = sbr.rel (%p275) target = $region40
      $region39: #{tpu_custom_call.1} parent=23 // pred_region
        %s278 = smul.u32 16, %s20
        %p279 = scmp.lt.s32.totalorder %s19, 1
        %s280 = scalar_select %p279, %s19, 1
        %p281 = scmp.lt.s32.totalorder %s278, 31
        %s282 = scalar_select %p281, %s278, 31
        %s283 = smul.addr %s280, 32
        %s284 = sadd.s32 %s282, %s283
        %s285 = smul.addr %s284, 8
        %s286 = scalar_lea.vmem %s3, %s285
        %s287 = smul.u32 16, %s20
      $region40: #{tpu_custom_call.1} parent=23 // pred_fallthru
        _
    $region24: #{tpu_custom_call.1} parent=5 // pred_fallthru
      _
    %p288 = scmp.le.s32.totalorder 1, %s12
    %p289 = scmp.lt.s32.totalorder %s12, 9
    %p290 = pnand %p288, %p289
    %p291 = pneg %p290
    // Predicated region
    $region41: #{tpu_custom_call.1} parent=5 // pred_check
      _
    $region42: #{tpu_custom_call.1} parent=5 // pred_check_branch
      %293 = sbr.rel (%p290) target = $region44
    $region43: #{tpu_custom_call.1} parent=5 // pred_region
      %s294 = ssub.s32 %s12, 1
      %s295 = smul.u32 16, %s23
      %p296 = scmp.lt.s32.totalorder %s22, 1
      %s297 = scalar_select %p296, %s22, 1
      %p298 = scmp.lt.s32.totalorder %s295, 31
      %s299 = scalar_select %p298, %s295, 31
      %s300 = smul.addr %s297, 32
      %s301 = sadd.s32 %s299, %s300
      %s302 = smul.addr %s301, 4
      %s303 = scalar_lea.vmem %s0, %s302
      %p304 = pneg %p59
      %p305 = pneg %p56
      %p306 = scmp.lt.s32.totalorder %s22, 1
      %s307 = scalar_select %p306, %s22, 1
      %p308 = scmp.lt.s32.totalorder %s24, 1
      %s309 = scalar_select %p308, %s24, 1
      %s310 = smul.addr %s307, 2
      %s311 = sadd.s32 %s309, %s310
      %s312 = smul.addr %s311, 4
      %s313 = scalar_lea.vmem %s1, %s312
      %p314 = pneg %p87
      %p315 = pneg %p84
      %s316 = smul.u32 16, %s24
      %p317 = scmp.lt.s32.totalorder %s22, 1
      %s318 = scalar_select %p317, %s22, 1
      %p319 = scmp.lt.s32.totalorder %s316, 31
      %s320 = scalar_select %p319, %s316, 31
      %s321 = smul.addr %s318, 32
      %s322 = sadd.s32 %s320, %s321
      %s323 = smul.addr %s322, 4
      %s324 = scalar_lea.vmem %s2, %s323
      %p325 = pneg %p115
      %p326 = pneg %p112
      %s327 = smul.u32 16, %s23
      %p328 = scmp.lt.s32.totalorder %s22, 1
      %s329 = scalar_select %p328, %s22, 1
      %p330 = scmp.lt.s32.totalorder %s327, 31
      %s331 = scalar_select %p330, %s327, 31
      %s332 = smul.addr %s329, 32
      %s333 = sadd.s32 %s331, %s332
      %s334 = smul.addr %s333, 8
      %s335 = scalar_lea.vmem %s3, %s334
      %p336 = pneg %p143
      %p337 = pneg %p140
      %p338 = pneg %p164
      %p339 = pneg %p161
      %p340 = pneg %p185
      %p341 = pneg %p182
      %p342 = pneg %p213
      %p343 = pneg %p210
      %s344 = smul.u32 16, %s23
      %p345 = scmp.lt.s32.totalorder %s22, 1
      %s346 = scalar_select %p345, %s22, 1
      %p347 = scmp.lt.s32.totalorder %s344, 31
      %s348 = scalar_select %p347, %s344, 31
      %s349 = smul.addr %s346, 32
      %s350 = sadd.s32 %s348, %s349
      %s351 = smul.addr %s350, 8
      %s352 = scalar_lea.vmem %s6, %s351
      %s353 = smul.u32 16, %s23
      %p354 = scmp.lt.s32.totalorder %s22, 1
      %s355 = scalar_select %p354, %s22, 1
      %p356 = scmp.lt.s32.totalorder %s353, 31
      %s357 = scalar_select %p356, %s353, 31
      %s358 = smul.addr %s355, 32
      %s359 = sadd.s32 %s357, %s358
      %s360 = smul.addr %s359, 4
      %s361 = scalar_lea.vmem %s0, %s360
      %s362 = smul.u32 16, %s23
      %p363 = scmp.lt.s32.totalorder %s22, 1
      %s364 = scalar_select %p363, %s22, 1
      %p365 = scmp.lt.s32.totalorder %s24, 1
      %s366 = scalar_select %p365, %s24, 1
      %s367 = smul.addr %s364, 2
      %s368 = sadd.s32 %s366, %s367
      %s369 = smul.addr %s368, 4
      %s370 = scalar_lea.vmem %s1, %s369
      %s371 = smul.u32 16, %s24
      %p372 = scmp.lt.s32.totalorder %s22, 1
      %s373 = scalar_select %p372, %s22, 1
      %p374 = scmp.lt.s32.totalorder %s371, 31
      %s375 = scalar_select %p374, %s371, 31
      %s376 = smul.addr %s373, 32
      %s377 = sadd.s32 %s375, %s376
      %s378 = smul.addr %s377, 4
      %s379 = scalar_lea.vmem %s2, %s378
      %s380 = smul.u32 16, %s24
      %s381 = smul.u32 16, %s23
      %p382 = scmp.lt.s32.totalorder %s22, 1
      %s383 = scalar_select %p382, %s22, 1
      %p384 = scmp.lt.s32.totalorder %s381, 31
      %s385 = scalar_select %p384, %s381, 31
      %s386 = smul.addr %s383, 32
      %s387 = sadd.s32 %s385, %s386
      %s388 = smul.addr %s387, 8
      %s389 = scalar_lea.vmem %s3, %s388
      %s390 = smul.u32 16, %s23
      %s391 = smul.u32 16, %s23
      %p392 = scmp.lt.s32.totalorder %s22, 1
      %s393 = scalar_select %p392, %s22, 1
      %p394 = scmp.lt.s32.totalorder %s391, 31
      %s395 = scalar_select %p394, %s391, 31
      %s396 = smul.addr %s393, 32
      %s397 = sadd.s32 %s395, %s396
      %s398 = smul.addr %s397, 8
      %s399 = scalar_lea.vmem %s6, %s398
      %s400 = smul.u32 16, %s23
      %p402 = scmp.eq.s32.totalorder %s24, 0
      // Predicated region
      $region45: #{tpu_custom_call.1} parent=43 // pred_check
        %p403 = pneg %p402
      $region46: #{tpu_custom_call.1} parent=43 // pred_check_branch
        %405 = sbr.rel (%p403) target = $region48
      $region47: #{tpu_custom_call.1} parent=43 // pred_region
        %vm406 = vcmask 7168
        %407 = vst.msk [vmem:[#allocation2] sm:$0xff] %vm406, -inf
        %408 = vst.msk [vmem:[#allocation2 + $0x8] sm:$0xff] %vm406, -inf
        %409 = vst.msk [vmem:[#allocation2 + $0x10] sm:$0xff] %vm406, -inf
        %410 = vst.msk [vmem:[#allocation2 + $0x18] sm:$0xff] %vm406, -inf
        %411 = vst.msk [vmem:[#allocation2 + $0x20] sm:$0xff] %vm406, -inf
        %412 = vst.msk [vmem:[#allocation2 + $0x28] sm:$0xff] %vm406, -inf
        %413 = vst.msk [vmem:[#allocation2 + $0x30] sm:$0xff] %vm406, -inf
        %414 = vst.msk [vmem:[#allocation2 + $0x38] sm:$0xff] %vm406, -inf
        %415 = vst.msk [vmem:[#allocation2 + $0x40] sm:$0xff] %vm406, -inf
        %416 = vst.msk [vmem:[#allocation2 + $0x48] sm:$0xff] %vm406, -inf
        %417 = vst.msk [vmem:[#allocation2 + $0x50] sm:$0xff] %vm406, -inf
        %418 = vst.msk [vmem:[#allocation2 + $0x58] sm:$0xff] %vm406, -inf
        %419 = vst.msk [vmem:[#allocation2 + $0x60] sm:$0xff] %vm406, -inf
        %420 = vst.msk [vmem:[#allocation2 + $0x68] sm:$0xff] %vm406, -inf
        %421 = vst.msk [vmem:[#allocation2 + $0x70] sm:$0xff] %vm406, -inf
        %422 = vst.msk [vmem:[#allocation2 + $0x78] sm:$0xff] %vm406, -inf
        %423 = vst.msk [vmem:[#allocation3] sm:$0xff] %vm406, 0.0
        %424 = vst.msk [vmem:[#allocation3 + $0x8] sm:$0xff] %vm406, 0.0
        %425 = vst.msk [vmem:[#allocation3 + $0x10] sm:$0xff] %vm406, 0.0
        %426 = vst.msk [vmem:[#allocation3 + $0x18] sm:$0xff] %vm406, 0.0
        %427 = vst.msk [vmem:[#allocation3 + $0x20] sm:$0xff] %vm406, 0.0
        %428 = vst.msk [vmem:[#allocation3 + $0x28] sm:$0xff] %vm406, 0.0
        %429 = vst.msk [vmem:[#allocation3 + $0x30] sm:$0xff] %vm406, 0.0
        %430 = vst.msk [vmem:[#allocation3 + $0x38] sm:$0xff] %vm406, 0.0
        %431 = vst.msk [vmem:[#allocation3 + $0x40] sm:$0xff] %vm406, 0.0
        %432 = vst.msk [vmem:[#allocation3 + $0x48] sm:$0xff] %vm406, 0.0
        %433 = vst.msk [vmem:[#allocation3 + $0x50] sm:$0xff] %vm406, 0.0
        %434 = vst.msk [vmem:[#allocation3 + $0x58] sm:$0xff] %vm406, 0.0
        %435 = vst.msk [vmem:[#allocation3 + $0x60] sm:$0xff] %vm406, 0.0
        %436 = vst.msk [vmem:[#allocation3 + $0x68] sm:$0xff] %vm406, 0.0
        %437 = vst.msk [vmem:[#allocation3 + $0x70] sm:$0xff] %vm406, 0.0
        %438 = vst.msk [vmem:[#allocation3 + $0x78] sm:$0xff] %vm406, 0.0
        %vm439 = vcmask 64512
        %440 = vst.msk [vmem:[#allocation4] sm:$0xff] %vm439, 0.0
        %441 = vst.msk [vmem:[#allocation4 + $0x8] sm:$0xff] %vm439, 0.0
        %442 = vst.msk [vmem:[#allocation4 + $0x10] sm:$0xff] %vm439, 0.0
        %443 = vst.msk [vmem:[#allocation4 + $0x18] sm:$0xff] %vm439, 0.0
        %444 = vst.msk [vmem:[#allocation4 + $0x20] sm:$0xff] %vm439, 0.0
        %445 = vst.msk [vmem:[#allocation4 + $0x28] sm:$0xff] %vm439, 0.0
        %446 = vst.msk [vmem:[#allocation4 + $0x30] sm:$0xff] %vm439, 0.0
        %447 = vst.msk [vmem:[#allocation4 + $0x38] sm:$0xff] %vm439, 0.0
        %448 = vst.msk [vmem:[#allocation4 + $0x40] sm:$0xff] %vm439, 0.0
        %449 = vst.msk [vmem:[#allocation4 + $0x48] sm:$0xff] %vm439, 0.0
        %450 = vst.msk [vmem:[#allocation4 + $0x50] sm:$0xff] %vm439, 0.0
        %451 = vst.msk [vmem:[#allocation4 + $0x58] sm:$0xff] %vm439, 0.0
        %452 = vst.msk [vmem:[#allocation4 + $0x60] sm:$0xff] %vm439, 0.0
        %453 = vst.msk [vmem:[#allocation4 + $0x68] sm:$0xff] %vm439, 0.0
        %454 = vst.msk [vmem:[#allocation4 + $0x70] sm:$0xff] %vm439, 0.0
        %455 = vst.msk [vmem:[#allocation4 + $0x78] sm:$0xff] %vm439, 0.0
      $region48: #{tpu_custom_call.1} parent=43 // pred_fallthru
        _
      %v456 = vld [vmem:[%s361] sm:$0xf]
      %v457 = vld [vmem:[%s361 + $0x4] sm:$0xf]
      %v458 = vld [vmem:[%s361 + $0x8] sm:$0xf]
      %v459 = vld [vmem:[%s361 + $0xc] sm:$0xf]
      %v460 = vld [vmem:[%s361 + $0x10] sm:$0xf]
      %v461 = vld [vmem:[%s361 + $0x14] sm:$0xf]
      %v462 = vld [vmem:[%s361 + $0x18] sm:$0xf]
      %v463 = vld [vmem:[%s361 + $0x1c] sm:$0xf]
      %v464 = vld [vmem:[%s361 + $0x20] sm:$0xf]
      %v465 = vld [vmem:[%s361 + $0x24] sm:$0xf]
      %v466 = vld [vmem:[%s361 + $0x28] sm:$0xf]
      %v467 = vld [vmem:[%s361 + $0x2c] sm:$0xf]
      %v468 = vld [vmem:[%s361 + $0x30] sm:$0xf]
      %v469 = vld [vmem:[%s361 + $0x34] sm:$0xf]
      %v470 = vld [vmem:[%s361 + $0x38] sm:$0xf]
      %v471 = vld [vmem:[%s361 + $0x3c] sm:$0xf]
      %v472 = vld [vmem:[%s370] sm:$0xf]
      %v473 = vld [vmem:[%s379] sm:$0xf]
      %v474 = vld [vmem:[%s379 + $0x4] sm:$0xf]
      %v475 = vld [vmem:[%s379 + $0x8] sm:$0xf]
      %v476 = vld [vmem:[%s379 + $0xc] sm:$0xf]
      %v477 = vld [vmem:[%s379 + $0x10] sm:$0xf]
      %v478 = vld [vmem:[%s379 + $0x14] sm:$0xf]
      %v479 = vld [vmem:[%s379 + $0x18] sm:$0xf]
      %v480 = vld [vmem:[%s379 + $0x1c] sm:$0xf]
      %v481 = vld [vmem:[%s379 + $0x20] sm:$0xf]
      %v482 = vld [vmem:[%s379 + $0x24] sm:$0xf]
      %v483 = vld [vmem:[%s379 + $0x28] sm:$0xf]
      %v484 = vld [vmem:[%s379 + $0x2c] sm:$0xf]
      %v485 = vld [vmem:[%s379 + $0x30] sm:$0xf]
      %v486 = vld [vmem:[%s379 + $0x34] sm:$0xf]
      %v487 = vld [vmem:[%s379 + $0x38] sm:$0xf]
      %v488 = vld [vmem:[%s379 + $0x3c] sm:$0xf]
      %v505 = vunpack.c.l.b16 %v456
      %v506 = vunpack.c.l.b16 %v457
      %v507 = vunpack.c.l.b16 %v458
      %v508 = vunpack.c.l.b16 %v459
      %v509 = vunpack.c.l.b16 %v460
      %v510 = vunpack.c.l.b16 %v461
      %v511 = vunpack.c.l.b16 %v462
      %v512 = vunpack.c.l.b16 %v463
      %v513 = vunpack.c.l.b16 %v464
      %v514 = vunpack.c.l.b16 %v465
      %v515 = vunpack.c.l.b16 %v466
      %v516 = vunpack.c.l.b16 %v467
      %v517 = vunpack.c.l.b16 %v468
      %v518 = vunpack.c.l.b16 %v469
      %v519 = vunpack.c.l.b16 %v470
      %v520 = vunpack.c.l.b16 %v471
      %v521 = vpack.c.b16 %v506, %v505
      %v522 = vpack.c.b16 %v508, %v507
      %v523 = vpack.c.b16 %v510, %v509
      %v524 = vpack.c.b16 %v512, %v511
      %v525 = vpack.c.b16 %v514, %v513
      %v526 = vpack.c.b16 %v516, %v515
      %v527 = vpack.c.b16 %v518, %v517
      %v528 = vpack.c.b16 %v520, %v519
      %vm529 = vcmask 64512
      %v531 = vsel %vm529, %v521, 0
      %v534 = vsel %vm529, %v522, 0
      %v537 = vsel %vm529, %v523, 0
      %v540 = vsel %vm529, %v524, 0
      %v543 = vsel %vm529, %v525, 0
      %v546 = vsel %vm529, %v526, 0
      %v549 = vsel %vm529, %v527, 0
      %v552 = vsel %vm529, %v528, 0
      %vm554 = vcmask 1043456
      %v556 = vsel %vm554, %v472, 0
      %558 = vmatprep.subr.bf16.mxu0 0
      %559 = vmatpush1.bf16.msra.mxu0 %v556
      %560 = vmatprep.subr.bf16.mxu0 0
      %561 = vmatpush1.bf16.msra.mxu0 0
      %562 = vmatprep.subr.bf16.mxu0 0
      %563 = vmatpush1.bf16.msra.mxu0 0
      %564 = vmatprep.subr.bf16.mxu0 0
      %565 = vmatpush1.bf16.msra.mxu0 0
      %566 = vmatprep.subr.bf16.mxu0 0
      %567 = vmatpush1.bf16.msra.mxu0 0
      %568 = vmatprep.subr.bf16.mxu0 0
      %569 = vmatpush1.bf16.msra.mxu0 0
      %570 = vmatprep.subr.bf16.mxu0 0
      %571 = vmatpush1.bf16.msra.mxu0 0
      %572 = vmatprep.subr.bf16.mxu0 0
      %573 = vmatpush1.bf16.msra.mxu0 0
      %574 = vmatprep.subr.bf16.mxu0 0
      %575 = vmatpush1.bf16.msra.mxu0 0
      %576 = vmatprep.subr.bf16.mxu0 0
      %577 = vmatpush1.bf16.msra.mxu0 0
      %578 = vmatprep.subr.bf16.mxu0 0
      %579 = vmatpush1.bf16.msra.mxu0 0
      %580 = vmatprep.subr.bf16.mxu0 0
      %581 = vmatpush1.bf16.msra.mxu0 0
      %582 = vmatprep.subr.bf16.mxu0 0
      %583 = vmatpush1.bf16.msra.mxu0 0
      %584 = vmatprep.subr.bf16.mxu0 0
      %585 = vmatpush1.bf16.msra.mxu0 0
      %586 = vmatprep.subr.bf16.mxu0 0
      %587 = vmatpush1.bf16.msra.mxu0 0
      %588 = vmatprep.subr.bf16.mxu0 0
      %589 = vmatpush1.bf16.msra.mxu0 0
      %590 = vmatprep.mubr.bf16.mxu0 0
      %591 = vmatmul.mubr.bf16.gmra.mrb[0].mxu0 %v531
      %v592 = vpop.f32.mrb[0].mxu0
      %v593 = vadd.f32 0.0, %v592
      %v594 = vpop.f32.mrb[0].mxu0
      %v595 = vpop.f32.mrb[0].mxu0
      %v596 = vadd.f32 0.0, %v595
      %v597 = vpop.f32.mrb[0].mxu0
      %598 = vmatprep.mubr.bf16.mxu0 0
      %599 = vmatmul.mubr.bf16.gmra.mrb[0].mxu0 %v534
      %v600 = vpop.f32.mrb[0].mxu0
      %v601 = vadd.f32 0.0, %v600
      %v602 = vpop.f32.mrb[0].mxu0
      %v603 = vpop.f32.mrb[0].mxu0
      %v604 = vadd.f32 0.0, %v603
      %v605 = vpop.f32.mrb[0].mxu0
      %606 = vmatprep.mubr.bf16.mxu0 0
      %607 = vmatmul.mubr.bf16.gmra.mrb[0].mxu0 %v537
      %v608 = vpop.f32.mrb[0].mxu0
      %v609 = vadd.f32 0.0, %v608
      %v610 = vpop.f32.mrb[0].mxu0
      %v611 = vpop.f32.mrb[0].mxu0
      %v612 = vadd.f32 0.0, %v611
      %v613 = vpop.f32.mrb[0].mxu0
      %614 = vmatprep.mubr.bf16.mxu0 0
      %615 = vmatmul.mubr.bf16.gmra.mrb[0].mxu0 %v540
      %v616 = vpop.f32.mrb[0].mxu0
      %v617 = vadd.f32 0.0, %v616
      %v618 = vpop.f32.mrb[0].mxu0
      %v619 = vpop.f32.mrb[0].mxu0
      %v620 = vadd.f32 0.0, %v619
      %v621 = vpop.f32.mrb[0].mxu0
      %622 = vmatprep.mubr.bf16.mxu0 0
      %623 = vmatmul.mubr.bf16.gmra.mrb[0].mxu0 %v543
      %v624 = vpop.f32.mrb[0].mxu0
      %v625 = vadd.f32 0.0, %v624
      %v626 = vpop.f32.mrb[0].mxu0
      %v627 = vpop.f32.mrb[0].mxu0
      %v628 = vadd.f32 0.0, %v627
      %v629 = vpop.f32.mrb[0].mxu0
      %630 = vmatprep.mubr.bf16.mxu0 0
      %631 = vmatmul.mubr.bf16.gmra.mrb[0].mxu0 %v546
      %v632 = vpop.f32.mrb[0].mxu0
      %v633 = vadd.f32 0.0, %v632
      %v634 = vpop.f32.mrb[0].mxu0
      %v635 = vpop.f32.mrb[0].mxu0
      %v636 = vadd.f32 0.0, %v635
      %v637 = vpop.f32.mrb[0].mxu0
      %638 = vmatprep.mubr.bf16.mxu0 0
      %639 = vmatmul.mubr.bf16.gmra.mrb[0].mxu0 %v549
      %v640 = vpop.f32.mrb[0].mxu0
      %v641 = vadd.f32 0.0, %v640
      %v642 = vpop.f32.mrb[0].mxu0
      %v643 = vpop.f32.mrb[0].mxu0
      %v644 = vadd.f32 0.0, %v643
      %v645 = vpop.f32.mrb[0].mxu0
      %646 = vmatprep.mubr.bf16.mxu0 0
      %647 = vmatmul.mubr.bf16.gmra.mrb[0].mxu0 %v552
      %v648 = vpop.f32.mrb[0].mxu0
      %v649 = vadd.f32 0.0, %v648
      %v650 = vpop.f32.mrb[0].mxu0
      %v651 = vpop.f32.mrb[0].mxu0
      %v652 = vadd.f32 0.0, %v651
      %v653 = vpop.f32.mrb[0].mxu0
      %654 = vdwg.mxu0
      %v655 = vld [vmem:[#allocation2] sm:$0xff]
      %v656 = vld [vmem:[#allocation2 + $0x8] sm:$0xff]
      %v657 = vld [vmem:[#allocation2 + $0x10] sm:$0xff]
      %v658 = vld [vmem:[#allocation2 + $0x18] sm:$0xff]
      %v659 = vld [vmem:[#allocation2 + $0x20] sm:$0xff]
      %v660 = vld [vmem:[#allocation2 + $0x28] sm:$0xff]
      %v661 = vld [vmem:[#allocation2 + $0x30] sm:$0xff]
      %v662 = vld [vmem:[#allocation2 + $0x38] sm:$0xff]
      %v663 = vld [vmem:[#allocation2 + $0x40] sm:$0xff]
      %v664 = vld [vmem:[#allocation2 + $0x48] sm:$0xff]
      %v665 = vld [vmem:[#allocation2 + $0x50] sm:$0xff]
      %v666 = vld [vmem:[#allocation2 + $0x58] sm:$0xff]
      %v667 = vld [vmem:[#allocation2 + $0x60] sm:$0xff]
      %v668 = vld [vmem:[#allocation2 + $0x68] sm:$0xff]
      %v669 = vld [vmem:[#allocation2 + $0x70] sm:$0xff]
      %v670 = vld [vmem:[#allocation2 + $0x78] sm:$0xff]
      %671 = vmax.xlane.f32.xlu0 %v593
      %v672 = vpop.xlane.xlu0 %671
      %673 = vmax.xlane.f32.xlu0 %v596
      %v674 = vpop.xlane.xlu0 %673
      %675 = vmax.xlane.f32.xlu0 %v601
      %v676 = vpop.xlane.xlu0 %675
      %677 = vmax.xlane.f32.xlu0 %v604
      %v678 = vpop.xlane.xlu0 %677
      %679 = vmax.xlane.f32.xlu0 %v609
      %v680 = vpop.xlane.xlu0 %679
      %681 = vmax.xlane.f32.xlu0 %v612
      %v682 = vpop.xlane.xlu0 %681
      %683 = vmax.xlane.f32.xlu0 %v617
      %v684 = vpop.xlane.xlu0 %683
      %685 = vmax.xlane.f32.xlu0 %v620
      %v686 = vpop.xlane.xlu0 %685
      %687 = vmax.xlane.f32.xlu0 %v625
      %v688 = vpop.xlane.xlu0 %687
      %689 = vmax.xlane.f32.xlu0 %v628
      %v690 = vpop.xlane.xlu0 %689
      %691 = vmax.xlane.f32.xlu0 %v633
      %v692 = vpop.xlane.xlu0 %691
      %693 = vmax.xlane.f32.xlu0 %v636
      %v694 = vpop.xlane.xlu0 %693
      %695 = vmax.xlane.f32.xlu0 %v641
      %v696 = vpop.xlane.xlu0 %695
      %697 = vmax.xlane.f32.xlu0 %v644
      %v698 = vpop.xlane.xlu0 %697
      %699 = vmax.xlane.f32.xlu0 %v649
      %v700 = vpop.xlane.xlu0 %699
      %701 = vmax.xlane.f32.xlu0 %v652
      %v702 = vpop.xlane.xlu0 %701
      %v703 = vmax.f32 %v655, %v672
      %v704 = vmax.f32 %v656, %v674
      %v705 = vmax.f32 %v657, %v676
      %v706 = vmax.f32 %v658, %v678
      %v707 = vmax.f32 %v659, %v680
      %v708 = vmax.f32 %v660, %v682
      %v709 = vmax.f32 %v661, %v684
      %v710 = vmax.f32 %v662, %v686
      %v711 = vmax.f32 %v663, %v688
      %v712 = vmax.f32 %v664, %v690
      %v713 = vmax.f32 %v665, %v692
      %v714 = vmax.f32 %v666, %v694
      %v715 = vmax.f32 %v667, %v696
      %v716 = vmax.f32 %v668, %v698
      %v717 = vmax.f32 %v669, %v700
      %v718 = vmax.f32 %v670, %v702
      %v719 = vsub.f32 %v655, %v703
      %v720 = vsub.f32 %v656, %v704
      %v721 = vsub.f32 %v657, %v705
      %v722 = vsub.f32 %v658, %v706
      %v723 = vsub.f32 %v659, %v707
      %v724 = vsub.f32 %v660, %v708
      %v725 = vsub.f32 %v661, %v709
      %v726 = vsub.f32 %v662, %v710
      %v727 = vsub.f32 %v663, %v711
      %v728 = vsub.f32 %v664, %v712
      %v729 = vsub.f32 %v665, %v713
      %v730 = vsub.f32 %v666, %v714
      %v731 = vsub.f32 %v667, %v715
      %v732 = vsub.f32 %v668, %v716
      %v733 = vsub.f32 %v669, %v717
      %v734 = vsub.f32 %v670, %v718
      %v735 = vmul.f32 %v719, 1.442695
      %v736 = vpow.pop %v735
      %v737 = vmul.f32 %v720, 1.442695
      %v738 = vpow.pop %v737
      %v739 = vmul.f32 %v721, 1.442695
      %v740 = vpow.pop %v739
      %v741 = vmul.f32 %v722, 1.442695
      %v742 = vpow.pop %v741
      %v743 = vmul.f32 %v723, 1.442695
      %v744 = vpow.pop %v743
      %v745 = vmul.f32 %v724, 1.442695
      %v746 = vpow.pop %v745
      %v747 = vmul.f32 %v725, 1.442695
      %v748 = vpow.pop %v747
      %v749 = vmul.f32 %v726, 1.442695
      %v750 = vpow.pop %v749
      %v751 = vmul.f32 %v727, 1.442695
      %v752 = vpow.pop %v751
      %v753 = vmul.f32 %v728, 1.442695
      %v754 = vpow.pop %v753
      %v755 = vmul.f32 %v729, 1.442695
      %v756 = vpow.pop %v755
      %v757 = vmul.f32 %v730, 1.442695
      %v758 = vpow.pop %v757
      %v759 = vmul.f32 %v731, 1.442695
      %v760 = vpow.pop %v759
      %v761 = vmul.f32 %v732, 1.442695
      %v762 = vpow.pop %v761
      %v763 = vmul.f32 %v733, 1.442695
      %v764 = vpow.pop %v763
      %v765 = vmul.f32 %v734, 1.442695
      %v766 = vpow.pop %v765
      %768 = vset.pattern.permute.xlu0 0
      %769 = vperm.xlu0 %768, %v703
      %v770 = vpop.permute.xlu0 %769
      %773 = vset.pattern.permute.xlu0 0
      %774 = vperm.xlu0 %773, %v704
      %v775 = vpop.permute.xlu0 %774
      %778 = vset.pattern.permute.xlu0 0
      %779 = vperm.xlu0 %778, %v705
      %v780 = vpop.permute.xlu0 %779
      %783 = vset.pattern.permute.xlu0 0
      %784 = vperm.xlu0 %783, %v706
      %v785 = vpop.permute.xlu0 %784
      %788 = vset.pattern.permute.xlu0 0
      %789 = vperm.xlu0 %788, %v707
      %v790 = vpop.permute.xlu0 %789
      %793 = vset.pattern.permute.xlu0 0
      %794 = vperm.xlu0 %793, %v708
      %v795 = vpop.permute.xlu0 %794
      %798 = vset.pattern.permute.xlu0 0
      %799 = vperm.xlu0 %798, %v709
      %v800 = vpop.permute.xlu0 %799
      %803 = vset.pattern.permute.xlu0 0
      %804 = vperm.xlu0 %803, %v710
      %v805 = vpop.permute.xlu0 %804
      %808 = vset.pattern.permute.xlu0 0
      %809 = vperm.xlu0 %808, %v711
      %v810 = vpop.permute.xlu0 %809
      %813 = vset.pattern.permute.xlu0 0
      %814 = vperm.xlu0 %813, %v712
      %v815 = vpop.permute.xlu0 %814
      %818 = vset.pattern.permute.xlu0 0
      %819 = vperm.xlu0 %818, %v713
      %v820 = vpop.permute.xlu0 %819
      %823 = vset.pattern.permute.xlu0 0
      %824 = vperm.xlu0 %823, %v714
      %v825 = vpop.permute.xlu0 %824
      %828 = vset.pattern.permute.xlu0 0
      %829 = vperm.xlu0 %828, %v715
      %v830 = vpop.permute.xlu0 %829
      %833 = vset.pattern.permute.xlu0 0
      %834 = vperm.xlu0 %833, %v716
      %v835 = vpop.permute.xlu0 %834
      %838 = vset.pattern.permute.xlu0 0
      %839 = vperm.xlu0 %838, %v717
      %v840 = vpop.permute.xlu0 %839
      %843 = vset.pattern.permute.xlu0 0
      %844 = vperm.xlu0 %843, %v718
      %v845 = vpop.permute.xlu0 %844
      %v847 = vsub.f32 %v593, %v770
      %v848 = vsub.f32 %v596, %v775
      %v849 = vsub.f32 %v601, %v780
      %v850 = vsub.f32 %v604, %v785
      %v851 = vsub.f32 %v609, %v790
      %v852 = vsub.f32 %v612, %v795
      %v853 = vsub.f32 %v617, %v800
      %v854 = vsub.f32 %v620, %v805
      %v855 = vsub.f32 %v625, %v810
      %v856 = vsub.f32 %v628, %v815
      %v857 = vsub.f32 %v633, %v820
      %v858 = vsub.f32 %v636, %v825
      %v859 = vsub.f32 %v641, %v830
      %v860 = vsub.f32 %v644, %v835
      %v861 = vsub.f32 %v649, %v840
      %v862 = vsub.f32 %v652, %v845
      %v863 = vmul.f32 %v847, 1.442695
      %v864 = vpow.pop %v863
      %v865 = vmul.f32 %v848, 1.442695
      %v866 = vpow.pop %v865
      %v867 = vmul.f32 %v849, 1.442695
      %v868 = vpow.pop %v867
      %v869 = vmul.f32 %v850, 1.442695
      %v870 = vpow.pop %v869
      %v871 = vmul.f32 %v851, 1.442695
      %v872 = vpow.pop %v871
      %v873 = vmul.f32 %v852, 1.442695
      %v874 = vpow.pop %v873
      %v875 = vmul.f32 %v853, 1.442695
      %v876 = vpow.pop %v875
      %v877 = vmul.f32 %v854, 1.442695
      %v878 = vpow.pop %v877
      %v879 = vmul.f32 %v855, 1.442695
      %v880 = vpow.pop %v879
      %v881 = vmul.f32 %v856, 1.442695
      %v882 = vpow.pop %v881
      %v883 = vmul.f32 %v857, 1.442695
      %v884 = vpow.pop %v883
      %v885 = vmul.f32 %v858, 1.442695
      %v886 = vpow.pop %v885
      %v887 = vmul.f32 %v859, 1.442695
      %v888 = vpow.pop %v887
      %v889 = vmul.f32 %v860, 1.442695
      %v890 = vpow.pop %v889
      %v891 = vmul.f32 %v861, 1.442695
      %v892 = vpow.pop %v891
      %v893 = vmul.f32 %v862, 1.442695
      %v894 = vpow.pop %v893
      %v895 = vld [vmem:[#allocation3] sm:$0xff]
      %v896 = vld [vmem:[#allocation3 + $0x8] sm:$0xff]
      %v897 = vld [vmem:[#allocation3 + $0x10] sm:$0xff]
      %v898 = vld [vmem:[#allocation3 + $0x18] sm:$0xff]
      %v899 = vld [vmem:[#allocation3 + $0x20] sm:$0xff]
      %v900 = vld [vmem:[#allocation3 + $0x28] sm:$0xff]
      %v901 = vld [vmem:[#allocation3 + $0x30] sm:$0xff]
      %v902 = vld [vmem:[#allocation3 + $0x38] sm:$0xff]
      %v903 = vld [vmem:[#allocation3 + $0x40] sm:$0xff]
      %v904 = vld [vmem:[#allocation3 + $0x48] sm:$0xff]
      %v905 = vld [vmem:[#allocation3 + $0x50] sm:$0xff]
      %v906 = vld [vmem:[#allocation3 + $0x58] sm:$0xff]
      %v907 = vld [vmem:[#allocation3 + $0x60] sm:$0xff]
      %v908 = vld [vmem:[#allocation3 + $0x68] sm:$0xff]
      %v909 = vld [vmem:[#allocation3 + $0x70] sm:$0xff]
      %v910 = vld [vmem:[#allocation3 + $0x78] sm:$0xff]
      %v911 = vmul.f32 %v736, %v895
      %v912 = vmul.f32 %v738, %v896
      %v913 = vmul.f32 %v740, %v897
      %v914 = vmul.f32 %v742, %v898
      %v915 = vmul.f32 %v744, %v899
      %v916 = vmul.f32 %v746, %v900
      %v917 = vmul.f32 %v748, %v901
      %v918 = vmul.f32 %v750, %v902
      %v919 = vmul.f32 %v752, %v903
      %v920 = vmul.f32 %v754, %v904
      %v921 = vmul.f32 %v756, %v905
      %v922 = vmul.f32 %v758, %v906
      %v923 = vmul.f32 %v760, %v907
      %v924 = vmul.f32 %v762, %v908
      %v925 = vmul.f32 %v764, %v909
      %v926 = vmul.f32 %v766, %v910
      %927 = vadd.xlane.f32.xlu0 %v864
      %v928 = vpop.xlane.xlu0 %927
      %929 = vadd.xlane.f32.xlu0 %v866
      %v930 = vpop.xlane.xlu0 %929
      %931 = vadd.xlane.f32.xlu0 %v868
      %v932 = vpop.xlane.xlu0 %931
      %933 = vadd.xlane.f32.xlu0 %v870
      %v934 = vpop.xlane.xlu0 %933
      %935 = vadd.xlane.f32.xlu0 %v872
      %v936 = vpop.xlane.xlu0 %935
      %937 = vadd.xlane.f32.xlu0 %v874
      %v938 = vpop.xlane.xlu0 %937
      %939 = vadd.xlane.f32.xlu0 %v876
      %v940 = vpop.xlane.xlu0 %939
      %941 = vadd.xlane.f32.xlu0 %v878
      %v942 = vpop.xlane.xlu0 %941
      %943 = vadd.xlane.f32.xlu0 %v880
      %v944 = vpop.xlane.xlu0 %943
      %945 = vadd.xlane.f32.xlu0 %v882
      %v946 = vpop.xlane.xlu0 %945
      %947 = vadd.xlane.f32.xlu0 %v884
      %v948 = vpop.xlane.xlu0 %947
      %949 = vadd.xlane.f32.xlu0 %v886
      %v950 = vpop.xlane.xlu0 %949
      %951 = vadd.xlane.f32.xlu0 %v888
      %v952 = vpop.xlane.xlu0 %951
      %953 = vadd.xlane.f32.xlu0 %v890
      %v954 = vpop.xlane.xlu0 %953
      %955 = vadd.xlane.f32.xlu0 %v892
      %v956 = vpop.xlane.xlu0 %955
      %957 = vadd.xlane.f32.xlu0 %v894
      %v958 = vpop.xlane.xlu0 %957
      %v959 = vadd.f32 %v911, %v928
      %v960 = vadd.f32 %v912, %v930
      %v961 = vadd.f32 %v913, %v932
      %v962 = vadd.f32 %v914, %v934
      %v963 = vadd.f32 %v915, %v936
      %v964 = vadd.f32 %v916, %v938
      %v965 = vadd.f32 %v917, %v940
      %v966 = vadd.f32 %v918, %v942
      %v967 = vadd.f32 %v919, %v944
      %v968 = vadd.f32 %v920, %v946
      %v969 = vadd.f32 %v921, %v948
      %v970 = vadd.f32 %v922, %v950
      %v971 = vadd.f32 %v923, %v952
      %v972 = vadd.f32 %v924, %v954
      %v973 = vadd.f32 %v925, %v956
      %v974 = vadd.f32 %v926, %v958
      %vm975 = vcmask 7168
      %976 = vst.msk [vmem:[#allocation3] sm:$0xff] %vm975, %v959
      %977 = vst.msk [vmem:[#allocation3 + $0x8] sm:$0xff] %vm975, %v960
      %978 = vst.msk [vmem:[#allocation3 + $0x10] sm:$0xff] %vm975, %v961
      %979 = vst.msk [vmem:[#allocation3 + $0x18] sm:$0xff] %vm975, %v962
      %980 = vst.msk [vmem:[#allocation3 + $0x20] sm:$0xff] %vm975, %v963
      %981 = vst.msk [vmem:[#allocation3 + $0x28] sm:$0xff] %vm975, %v964
      %982 = vst.msk [vmem:[#allocation3 + $0x30] sm:$0xff] %vm975, %v965
      %983 = vst.msk [vmem:[#allocation3 + $0x38] sm:$0xff] %vm975, %v966
      %984 = vst.msk [vmem:[#allocation3 + $0x40] sm:$0xff] %vm975, %v967
      %985 = vst.msk [vmem:[#allocation3 + $0x48] sm:$0xff] %vm975, %v968
      %986 = vst.msk [vmem:[#allocation3 + $0x50] sm:$0xff] %vm975, %v969
      %987 = vst.msk [vmem:[#allocation3 + $0x58] sm:$0xff] %vm975, %v970
      %988 = vst.msk [vmem:[#allocation3 + $0x60] sm:$0xff] %vm975, %v971
      %989 = vst.msk [vmem:[#allocation3 + $0x68] sm:$0xff] %vm975, %v972
      %990 = vst.msk [vmem:[#allocation3 + $0x70] sm:$0xff] %vm975, %v973
      %991 = vst.msk [vmem:[#allocation3 + $0x78] sm:$0xff] %vm975, %v974
      %v992 = vld [vmem:[#allocation4] sm:$0xff]
      %v993 = vld [vmem:[#allocation4 + $0x8] sm:$0xff]
      %v994 = vld [vmem:[#allocation4 + $0x10] sm:$0xff]
      %v995 = vld [vmem:[#allocation4 + $0x18] sm:$0xff]
      %v996 = vld [vmem:[#allocation4 + $0x20] sm:$0xff]
      %v997 = vld [vmem:[#allocation4 + $0x28] sm:$0xff]
      %v998 = vld [vmem:[#allocation4 + $0x30] sm:$0xff]
      %v999 = vld [vmem:[#allocation4 + $0x38] sm:$0xff]
      %v1000 = vld [vmem:[#allocation4 + $0x40] sm:$0xff]
      %v1001 = vld [vmem:[#allocation4 + $0x48] sm:$0xff]
      %v1002 = vld [vmem:[#allocation4 + $0x50] sm:$0xff]
      %v1003 = vld [vmem:[#allocation4 + $0x58] sm:$0xff]
      %v1004 = vld [vmem:[#allocation4 + $0x60] sm:$0xff]
      %v1005 = vld [vmem:[#allocation4 + $0x68] sm:$0xff]
      %v1006 = vld [vmem:[#allocation4 + $0x70] sm:$0xff]
      %v1007 = vld [vmem:[#allocation4 + $0x78] sm:$0xff]
      %1009 = vset.pattern.permute.xlu0 0
      %1010 = vperm.xlu0 %1009, %v736
      %v1011 = vpop.permute.xlu0 %1010
      %1014 = vset.pattern.permute.xlu0 0
      %1015 = vperm.xlu0 %1014, %v738
      %v1016 = vpop.permute.xlu0 %1015
      %1019 = vset.pattern.permute.xlu0 0
      %1020 = vperm.xlu0 %1019, %v740
      %v1021 = vpop.permute.xlu0 %1020
      %1024 = vset.pattern.permute.xlu0 0
      %1025 = vperm.xlu0 %1024, %v742
      %v1026 = vpop.permute.xlu0 %1025
      %1029 = vset.pattern.permute.xlu0 0
      %1030 = vperm.xlu0 %1029, %v744
      %v1031 = vpop.permute.xlu0 %1030
      %1034 = vset.pattern.permute.xlu0 0
      %1035 = vperm.xlu0 %1034, %v746
      %v1036 = vpop.permute.xlu0 %1035
      %1039 = vset.pattern.permute.xlu0 0
      %1040 = vperm.xlu0 %1039, %v748
      %v1041 = vpop.permute.xlu0 %1040
      %1044 = vset.pattern.permute.xlu0 0
      %1045 = vperm.xlu0 %1044, %v750
      %v1046 = vpop.permute.xlu0 %1045
      %1049 = vset.pattern.permute.xlu0 0
      %1050 = vperm.xlu0 %1049, %v752
      %v1051 = vpop.permute.xlu0 %1050
      %1054 = vset.pattern.permute.xlu0 0
      %1055 = vperm.xlu0 %1054, %v754
      %v1056 = vpop.permute.xlu0 %1055
      %1059 = vset.pattern.permute.xlu0 0
      %1060 = vperm.xlu0 %1059, %v756
      %v1061 = vpop.permute.xlu0 %1060
      %1064 = vset.pattern.permute.xlu0 0
      %1065 = vperm.xlu0 %1064, %v758
      %v1066 = vpop.permute.xlu0 %1065
      %1069 = vset.pattern.permute.xlu0 0
      %1070 = vperm.xlu0 %1069, %v760
      %v1071 = vpop.permute.xlu0 %1070
      %1074 = vset.pattern.permute.xlu0 0
      %1075 = vperm.xlu0 %1074, %v762
      %v1076 = vpop.permute.xlu0 %1075
      %1079 = vset.pattern.permute.xlu0 0
      %1080 = vperm.xlu0 %1079, %v764
      %v1081 = vpop.permute.xlu0 %1080
      %1084 = vset.pattern.permute.xlu0 0
      %1085 = vperm.xlu0 %1084, %v766
      %v1086 = vpop.permute.xlu0 %1085
      %v1088 = vmul.f32 %v1011, %v992
      %v1089 = vmul.f32 %v1016, %v993
      %v1090 = vmul.f32 %v1021, %v994
      %v1091 = vmul.f32 %v1026, %v995
      %v1092 = vmul.f32 %v1031, %v996
      %v1093 = vmul.f32 %v1036, %v997
      %v1094 = vmul.f32 %v1041, %v998
      %v1095 = vmul.f32 %v1046, %v999
      %v1096 = vmul.f32 %v1051, %v1000
      %v1097 = vmul.f32 %v1056, %v1001
      %v1098 = vmul.f32 %v1061, %v1002
      %v1099 = vmul.f32 %v1066, %v1003
      %v1100 = vmul.f32 %v1071, %v1004
      %v1101 = vmul.f32 %v1076, %v1005
      %v1102 = vmul.f32 %v1081, %v1006
      %v1103 = vmul.f32 %v1086, %v1007
      %v1104 = vpack.c.bf16 %v866, %v864
      %v1105 = vpack.c.bf16 %v870, %v868
      %v1106 = vpack.c.bf16 %v874, %v872
      %v1107 = vpack.c.bf16 %v878, %v876
      %v1108 = vpack.c.bf16 %v882, %v880
      %v1109 = vpack.c.bf16 %v886, %v884
      %v1110 = vpack.c.bf16 %v890, %v888
      %v1111 = vpack.c.bf16 %v894, %v892
      %v1128 = vunpack.c.l.b16 %v473
      %v1129 = vunpack.c.l.b16 %v474
      %v1130 = vunpack.c.l.b16 %v475
      %v1131 = vunpack.c.l.b16 %v476
      %v1132 = vunpack.c.l.b16 %v477
      %v1133 = vunpack.c.l.b16 %v478
      %v1134 = vunpack.c.l.b16 %v479
      %v1135 = vunpack.c.l.b16 %v480
      %v1136 = vunpack.c.l.b16 %v481
      %v1137 = vunpack.c.l.b16 %v482
      %v1138 = vunpack.c.l.b16 %v483
      %v1139 = vunpack.c.l.b16 %v484
      %v1140 = vunpack.c.l.b16 %v485
      %v1141 = vunpack.c.l.b16 %v486
      %v1142 = vunpack.c.l.b16 %v487
      %v1143 = vunpack.c.l.b16 %v488
      %v1144 = vpack.c.b16 %v1129, %v1128
      %v1145 = vpack.c.b16 %v1131, %v1130
      %v1146 = vpack.c.b16 %v1133, %v1132
      %v1147 = vpack.c.b16 %v1135, %v1134
      %v1148 = vpack.c.b16 %v1137, %v1136
      %v1149 = vpack.c.b16 %v1139, %v1138
      %v1150 = vpack.c.b16 %v1141, %v1140
      %v1151 = vpack.c.b16 %v1143, %v1142
      %1160 = vmatprep.subr.bf16.mxu0 0
      %1161 = vmatpush1.bf16.msra.mxu0 %v1144
      %1162 = vmatprep.subr.bf16.mxu0 0
      %1163 = vmatpush1.bf16.msra.mxu0 %v1145
      %1164 = vmatprep.subr.bf16.mxu0 0
      %1165 = vmatpush1.bf16.msra.mxu0 %v1146
      %1166 = vmatprep.subr.bf16.mxu0 0
      %1167 = vmatpush1.bf16.msra.mxu0 %v1147
      %1168 = vmatprep.subr.bf16.mxu0 0
      %1169 = vmatpush1.bf16.msra.mxu0 %v1148
      %1170 = vmatprep.subr.bf16.mxu0 0
      %1171 = vmatpush1.bf16.msra.mxu0 %v1149
      %1172 = vmatprep.subr.bf16.mxu0 0
      %1173 = vmatpush1.bf16.msra.mxu0 %v1150
      %1174 = vmatprep.subr.bf16.mxu0 0
      %1175 = vmatpush1.bf16.msra.mxu0 %v1151
      %1176 = vmatprep.subr.bf16.mxu0 0
      %1177 = vmatpush1.bf16.msra.mxu0 0
      %1178 = vmatprep.subr.bf16.mxu0 0
      %1179 = vmatpush1.bf16.msra.mxu0 0
      %1180 = vmatprep.subr.bf16.mxu0 0
      %1181 = vmatpush1.bf16.msra.mxu0 0
      %1182 = vmatprep.subr.bf16.mxu0 0
      %1183 = vmatpush1.bf16.msra.mxu0 0
      %1184 = vmatprep.subr.bf16.mxu0 0
      %1185 = vmatpush1.bf16.msra.mxu0 0
      %1186 = vmatprep.subr.bf16.mxu0 0
      %1187 = vmatpush1.bf16.msra.mxu0 0
      %1188 = vmatprep.subr.bf16.mxu0 0
      %1189 = vmatpush1.bf16.msra.mxu0 0
      %1190 = vmatprep.subr.bf16.mxu0 0
      %1191 = vmatpush1.bf16.msra.mxu0 0
      %1192 = vmatprep.mubr.bf16.mxu0 0
      %1193 = vmatmul.mubr.bf16.gmra.mrb[0].mxu0 %v1104
      %v1194 = vpop.f32.mrb[0].mxu0
      %v1195 = vadd.f32 0.0, %v1194
      %v1196 = vpop.f32.mrb[0].mxu0
      %v1197 = vpop.f32.mrb[0].mxu0
      %v1198 = vadd.f32 0.0, %v1197
      %v1199 = vpop.f32.mrb[0].mxu0
      %1200 = vmatprep.mubr.bf16.mxu0 0
      %1201 = vmatmul.mubr.bf16.gmra.mrb[0].mxu0 %v1105
      %v1202 = vpop.f32.mrb[0].mxu0
      %v1203 = vadd.f32 0.0, %v1202
      %v1204 = vpop.f32.mrb[0].mxu0
      %v1205 = vpop.f32.mrb[0].mxu0
      %v1206 = vadd.f32 0.0, %v1205
      %v1207 = vpop.f32.mrb[0].mxu0
      %1208 = vmatprep.mubr.bf16.mxu0 0
      %1209 = vmatmul.mubr.bf16.gmra.mrb[0].mxu0 %v1106
      %v1210 = vpop.f32.mrb[0].mxu0
      %v1211 = vadd.f32 0.0, %v1210
      %v1212 = vpop.f32.mrb[0].mxu0
      %v1213 = vpop.f32.mrb[0].mxu0
      %v1214 = vadd.f32 0.0, %v1213
      %v1215 = vpop.f32.mrb[0].mxu0
      %1216 = vmatprep.mubr.bf16.mxu0 0
      %1217 = vmatmul.mubr.bf16.gmra.mrb[0].mxu0 %v1107
      %v1218 = vpop.f32.mrb[0].mxu0
      %v1219 = vadd.f32 0.0, %v1218
      %v1220 = vpop.f32.mrb[0].mxu0
      %v1221 = vpop.f32.mrb[0].mxu0
      %v1222 = vadd.f32 0.0, %v1221
      %v1223 = vpop.f32.mrb[0].mxu0
      %1224 = vmatprep.mubr.bf16.mxu0 0
      %1225 = vmatmul.mubr.bf16.gmra.mrb[0].mxu0 %v1108
      %v1226 = vpop.f32.mrb[0].mxu0
      %v1227 = vadd.f32 0.0, %v1226
      %v1228 = vpop.f32.mrb[0].mxu0
      %v1229 = vpop.f32.mrb[0].mxu0
      %v1230 = vadd.f32 0.0, %v1229
      %v1231 = vpop.f32.mrb[0].mxu0
      %1232 = vmatprep.mubr.bf16.mxu0 0
      %1233 = vmatmul.mubr.bf16.gmra.mrb[0].mxu0 %v1109
      %v1234 = vpop.f32.mrb[0].mxu0
      %v1235 = vadd.f32 0.0, %v1234
      %v1236 = vpop.f32.mrb[0].mxu0
      %v1237 = vpop.f32.mrb[0].mxu0
      %v1238 = vadd.f32 0.0, %v1237
      %v1239 = vpop.f32.mrb[0].mxu0
      %1240 = vmatprep.mubr.bf16.mxu0 0
      %1241 = vmatmul.mubr.bf16.gmra.mrb[0].mxu0 %v1110
      %v1242 = vpop.f32.mrb[0].mxu0
      %v1243 = vadd.f32 0.0, %v1242
      %v1244 = vpop.f32.mrb[0].mxu0
      %v1245 = vpop.f32.mrb[0].mxu0
      %v1246 = vadd.f32 0.0, %v1245
      %v1247 = vpop.f32.mrb[0].mxu0
      %1248 = vmatprep.mubr.bf16.mxu0 0
      %1249 = vmatmul.mubr.bf16.gmra.mrb[0].mxu0 %v1111
      %v1250 = vpop.f32.mrb[0].mxu0
      %v1251 = vadd.f32 0.0, %v1250
      %v1252 = vpop.f32.mrb[0].mxu0
      %v1253 = vpop.f32.mrb[0].mxu0
      %v1254 = vadd.f32 0.0, %v1253
      %v1255 = vpop.f32.mrb[0].mxu0
      %1256 = vdwg.mxu0
      %v1257 = vadd.f32 %v1088, %v1195
      %v1258 = vadd.f32 %v1089, %v1198
      %v1259 = vadd.f32 %v1090, %v1203
      %v1260 = vadd.f32 %v1091, %v1206
      %v1261 = vadd.f32 %v1092, %v1211
      %v1262 = vadd.f32 %v1093, %v1214
      %v1263 = vadd.f32 %v1094, %v1219
      %v1264 = vadd.f32 %v1095, %v1222
      %v1265 = vadd.f32 %v1096, %v1227
      %v1266 = vadd.f32 %v1097, %v1230
      %v1267 = vadd.f32 %v1098, %v1235
      %v1268 = vadd.f32 %v1099, %v1238
      %v1269 = vadd.f32 %v1100, %v1243
      %v1270 = vadd.f32 %v1101, %v1246
      %v1271 = vadd.f32 %v1102, %v1251
      %v1272 = vadd.f32 %v1103, %v1254
      %1273 = vst.msk [vmem:[#allocation4] sm:$0xff] %vm529, %v1257
      %1274 = vst.msk [vmem:[#allocation4 + $0x8] sm:$0xff] %vm529, %v1258
      %1275 = vst.msk [vmem:[#allocation4 + $0x10] sm:$0xff] %vm529, %v1259
      %1276 = vst.msk [vmem:[#allocation4 + $0x18] sm:$0xff] %vm529, %v1260
      %1277 = vst.msk [vmem:[#allocation4 + $0x20] sm:$0xff] %vm529, %v1261
      %1278 = vst.msk [vmem:[#allocation4 + $0x28] sm:$0xff] %vm529, %v1262
      %1279 = vst.msk [vmem:[#allocation4 + $0x30] sm:$0xff] %vm529, %v1263
      %1280 = vst.msk [vmem:[#allocation4 + $0x38] sm:$0xff] %vm529, %v1264
      %1281 = vst.msk [vmem:[#allocation4 + $0x40] sm:$0xff] %vm529, %v1265
      %1282 = vst.msk [vmem:[#allocation4 + $0x48] sm:$0xff] %vm529, %v1266
      %1283 = vst.msk [vmem:[#allocation4 + $0x50] sm:$0xff] %vm529, %v1267
      %1284 = vst.msk [vmem:[#allocation4 + $0x58] sm:$0xff] %vm529, %v1268
      %1285 = vst.msk [vmem:[#allocation4 + $0x60] sm:$0xff] %vm529, %v1269
      %1286 = vst.msk [vmem:[#allocation4 + $0x68] sm:$0xff] %vm529, %v1270
      %1287 = vst.msk [vmem:[#allocation4 + $0x70] sm:$0xff] %vm529, %v1271
      %1288 = vst.msk [vmem:[#allocation4 + $0x78] sm:$0xff] %vm529, %v1272
      %1289 = vst.msk [vmem:[#allocation2] sm:$0xff] %vm975, %v703
      %1290 = vst.msk [vmem:[#allocation2 + $0x8] sm:$0xff] %vm975, %v704
      %1291 = vst.msk [vmem:[#allocation2 + $0x10] sm:$0xff] %vm975, %v705
      %1292 = vst.msk [vmem:[#allocation2 + $0x18] sm:$0xff] %vm975, %v706
      %1293 = vst.msk [vmem:[#allocation2 + $0x20] sm:$0xff] %vm975, %v707
      %1294 = vst.msk [vmem:[#allocation2 + $0x28] sm:$0xff] %vm975, %v708
      %1295 = vst.msk [vmem:[#allocation2 + $0x30] sm:$0xff] %vm975, %v709
      %1296 = vst.msk [vmem:[#allocation2 + $0x38] sm:$0xff] %vm975, %v710
      %1297 = vst.msk [vmem:[#allocation2 + $0x40] sm:$0xff] %vm975, %v711
      %1298 = vst.msk [vmem:[#allocation2 + $0x48] sm:$0xff] %vm975, %v712
      %1299 = vst.msk [vmem:[#allocation2 + $0x50] sm:$0xff] %vm975, %v713
      %1300 = vst.msk [vmem:[#allocation2 + $0x58] sm:$0xff] %vm975, %v714
      %1301 = vst.msk [vmem:[#allocation2 + $0x60] sm:$0xff] %vm975, %v715
      %1302 = vst.msk [vmem:[#allocation2 + $0x68] sm:$0xff] %vm975, %v716
      %1303 = vst.msk [vmem:[#allocation2 + $0x70] sm:$0xff] %vm975, %v717
      %1304 = vst.msk [vmem:[#allocation2 + $0x78] sm:$0xff] %vm975, %v718
      %p1305 = scmp.eq.s32.totalorder %s24, 1
      // Predicated region
      $region49: #{tpu_custom_call.1} parent=43 // pred_check
        %p1306 = pneg %p1305
      $region50: #{tpu_custom_call.1} parent=43 // pred_check_branch
        %1308 = sbr.rel (%p1306) target = $region52
      $region51: #{tpu_custom_call.1} parent=43 // pred_region
        %v1309 = vld [vmem:[#allocation4] sm:$0xff]
        %v1310 = vld [vmem:[#allocation4 + $0x8] sm:$0xff]
        %v1311 = vld [vmem:[#allocation4 + $0x10] sm:$0xff]
        %v1312 = vld [vmem:[#allocation4 + $0x18] sm:$0xff]
        %v1313 = vld [vmem:[#allocation4 + $0x20] sm:$0xff]
        %v1314 = vld [vmem:[#allocation4 + $0x28] sm:$0xff]
        %v1315 = vld [vmem:[#allocation4 + $0x30] sm:$0xff]
        %v1316 = vld [vmem:[#allocation4 + $0x38] sm:$0xff]
        %v1317 = vld [vmem:[#allocation4 + $0x40] sm:$0xff]
        %v1318 = vld [vmem:[#allocation4 + $0x48] sm:$0xff]
        %v1319 = vld [vmem:[#allocation4 + $0x50] sm:$0xff]
        %v1320 = vld [vmem:[#allocation4 + $0x58] sm:$0xff]
        %v1321 = vld [vmem:[#allocation4 + $0x60] sm:$0xff]
        %v1322 = vld [vmem:[#allocation4 + $0x68] sm:$0xff]
        %v1323 = vld [vmem:[#allocation4 + $0x70] sm:$0xff]
        %v1324 = vld [vmem:[#allocation4 + $0x78] sm:$0xff]
        %v1325 = vld [vmem:[#allocation3] sm:$0xff]
        %v1326 = vld [vmem:[#allocation3 + $0x8] sm:$0xff]
        %v1327 = vld [vmem:[#allocation3 + $0x10] sm:$0xff]
        %v1328 = vld [vmem:[#allocation3 + $0x18] sm:$0xff]
        %v1329 = vld [vmem:[#allocation3 + $0x20] sm:$0xff]
        %v1330 = vld [vmem:[#allocation3 + $0x28] sm:$0xff]
        %v1331 = vld [vmem:[#allocation3 + $0x30] sm:$0xff]
        %v1332 = vld [vmem:[#allocation3 + $0x38] sm:$0xff]
        %v1333 = vld [vmem:[#allocation3 + $0x40] sm:$0xff]
        %v1334 = vld [vmem:[#allocation3 + $0x48] sm:$0xff]
        %v1335 = vld [vmem:[#allocation3 + $0x50] sm:$0xff]
        %v1336 = vld [vmem:[#allocation3 + $0x58] sm:$0xff]
        %v1337 = vld [vmem:[#allocation3 + $0x60] sm:$0xff]
        %v1338 = vld [vmem:[#allocation3 + $0x68] sm:$0xff]
        %v1339 = vld [vmem:[#allocation3 + $0x70] sm:$0xff]
        %v1340 = vld [vmem:[#allocation3 + $0x78] sm:$0xff]
        %v1341 = vrcp.pop %v1325
        %v1342 = vrcp.pop %v1326
        %v1343 = vrcp.pop %v1327
        %v1344 = vrcp.pop %v1328
        %v1345 = vrcp.pop %v1329
        %v1346 = vrcp.pop %v1330
        %v1347 = vrcp.pop %v1331
        %v1348 = vrcp.pop %v1332
        %v1349 = vrcp.pop %v1333
        %v1350 = vrcp.pop %v1334
        %v1351 = vrcp.pop %v1335
        %v1352 = vrcp.pop %v1336
        %v1353 = vrcp.pop %v1337
        %v1354 = vrcp.pop %v1338
        %v1355 = vrcp.pop %v1339
        %v1356 = vrcp.pop %v1340
        %1358 = vset.pattern.permute.xlu0 0
        %1359 = vperm.xlu0 %1358, %v1341
        %v1360 = vpop.permute.xlu0 %1359
        %1363 = vset.pattern.permute.xlu0 0
        %1364 = vperm.xlu0 %1363, %v1342
        %v1365 = vpop.permute.xlu0 %1364
        %1368 = vset.pattern.permute.xlu0 0
        %1369 = vperm.xlu0 %1368, %v1343
        %v1370 = vpop.permute.xlu0 %1369
        %1373 = vset.pattern.permute.xlu0 0
        %1374 = vperm.xlu0 %1373, %v1344
        %v1375 = vpop.permute.xlu0 %1374
        %1378 = vset.pattern.permute.xlu0 0
        %1379 = vperm.xlu0 %1378, %v1345
        %v1380 = vpop.permute.xlu0 %1379
        %1383 = vset.pattern.permute.xlu0 0
        %1384 = vperm.xlu0 %1383, %v1346
        %v1385 = vpop.permute.xlu0 %1384
        %1388 = vset.pattern.permute.xlu0 0
        %1389 = vperm.xlu0 %1388, %v1347
        %v1390 = vpop.permute.xlu0 %1389
        %1393 = vset.pattern.permute.xlu0 0
        %1394 = vperm.xlu0 %1393, %v1348
        %v1395 = vpop.permute.xlu0 %1394
        %1398 = vset.pattern.permute.xlu0 0
        %1399 = vperm.xlu0 %1398, %v1349
        %v1400 = vpop.permute.xlu0 %1399
        %1403 = vset.pattern.permute.xlu0 0
        %1404 = vperm.xlu0 %1403, %v1350
        %v1405 = vpop.permute.xlu0 %1404
        %1408 = vset.pattern.permute.xlu0 0
        %1409 = vperm.xlu0 %1408, %v1351
        %v1410 = vpop.permute.xlu0 %1409
        %1413 = vset.pattern.permute.xlu0 0
        %1414 = vperm.xlu0 %1413, %v1352
        %v1415 = vpop.permute.xlu0 %1414
        %1418 = vset.pattern.permute.xlu0 0
        %1419 = vperm.xlu0 %1418, %v1353
        %v1420 = vpop.permute.xlu0 %1419
        %1423 = vset.pattern.permute.xlu0 0
        %1424 = vperm.xlu0 %1423, %v1354
        %v1425 = vpop.permute.xlu0 %1424
        %1428 = vset.pattern.permute.xlu0 0
        %1429 = vperm.xlu0 %1428, %v1355
        %v1430 = vpop.permute.xlu0 %1429
        %1433 = vset.pattern.permute.xlu0 0
        %1434 = vperm.xlu0 %1433, %v1356
        %v1435 = vpop.permute.xlu0 %1434
        %v1437 = vmul.f32 %v1309, %v1360
        %v1438 = vmul.f32 %v1310, %v1365
        %v1439 = vmul.f32 %v1311, %v1370
        %v1440 = vmul.f32 %v1312, %v1375
        %v1441 = vmul.f32 %v1313, %v1380
        %v1442 = vmul.f32 %v1314, %v1385
        %v1443 = vmul.f32 %v1315, %v1390
        %v1444 = vmul.f32 %v1316, %v1395
        %v1445 = vmul.f32 %v1317, %v1400
        %v1446 = vmul.f32 %v1318, %v1405
        %v1447 = vmul.f32 %v1319, %v1410
        %v1448 = vmul.f32 %v1320, %v1415
        %v1449 = vmul.f32 %v1321, %v1420
        %v1450 = vmul.f32 %v1322, %v1425
        %v1451 = vmul.f32 %v1323, %v1430
        %v1452 = vmul.f32 %v1324, %v1435
        %v1453 = vpack.c.bf16 %v1438, %v1437
        %v1454 = vpack.c.bf16 %v1440, %v1439
        %v1455 = vpack.c.bf16 %v1442, %v1441
        %v1456 = vpack.c.bf16 %v1444, %v1443
        %v1457 = vpack.c.bf16 %v1446, %v1445
        %v1458 = vpack.c.bf16 %v1448, %v1447
        %v1459 = vpack.c.bf16 %v1450, %v1449
        %v1460 = vpack.c.bf16 %v1452, %v1451
        %v1461 = vld [vmem:[%s4] sm:$0xf]
        %v1462 = vld [vmem:[%s5] sm:$0x1]
        %v1464 = vlaneseq
        %v1465 = vshrl.u32 %v1464, 7
        %v1466 = vsub.s32 0, %v1465
        %v1467 = vrot.slane %v1462, %v1466
        %v1470 = vsel %vm529, %v1453, 0
        %v1473 = vsel %vm529, %v1454, 0
        %v1476 = vsel %vm529, %v1455, 0
        %v1479 = vsel %vm529, %v1456, 0
        %v1482 = vsel %vm529, %v1457, 0
        %v1485 = vsel %vm529, %v1458, 0
        %v1488 = vsel %vm529, %v1459, 0
        %v1491 = vsel %vm529, %v1460, 0
        %v1494 = vsel %vm554, %v1461, 0
        %1496 = vmatprep.subr.bf16.mxu0 0
        %1497 = vmatpush1.bf16.msra.mxu0 %v1494
        %1498 = vmatprep.subr.bf16.mxu0 0
        %1499 = vmatpush1.bf16.msra.mxu0 0
        %1500 = vmatprep.subr.bf16.mxu0 0
        %1501 = vmatpush1.bf16.msra.mxu0 0
        %1502 = vmatprep.subr.bf16.mxu0 0
        %1503 = vmatpush1.bf16.msra.mxu0 0
        %1504 = vmatprep.subr.bf16.mxu0 0
        %1505 = vmatpush1.bf16.msra.mxu0 0
        %1506 = vmatprep.subr.bf16.mxu0 0
        %1507 = vmatpush1.bf16.msra.mxu0 0
        %1508 = vmatprep.subr.bf16.mxu0 0
        %1509 = vmatpush1.bf16.msra.mxu0 0
        %1510 = vmatprep.subr.bf16.mxu0 0
        %1511 = vmatpush1.bf16.msra.mxu0 0
        %1512 = vmatprep.subr.bf16.mxu0 0
        %1513 = vmatpush1.bf16.msra.mxu0 0
        %1514 = vmatprep.subr.bf16.mxu0 0
        %1515 = vmatpush1.bf16.msra.mxu0 0
        %1516 = vmatprep.subr.bf16.mxu0 0
        %1517 = vmatpush1.bf16.msra.mxu0 0
        %1518 = vmatprep.subr.bf16.mxu0 0
        %1519 = vmatpush1.bf16.msra.mxu0 0
        %1520 = vmatprep.subr.bf16.mxu0 0
        %1521 = vmatpush1.bf16.msra.mxu0 0
        %1522 = vmatprep.subr.bf16.mxu0 0
        %1523 = vmatpush1.bf16.msra.mxu0 0
        %1524 = vmatprep.subr.bf16.mxu0 0
        %1525 = vmatpush1.bf16.msra.mxu0 0
        %1526 = vmatprep.subr.bf16.mxu0 0
        %1527 = vmatpush1.bf16.msra.mxu0 0
        %1528 = vmatprep.mubr.bf16.mxu0 0
        %1529 = vmatmul.mubr.bf16.gmra.mrb[0].mxu0 %v1470
        %v1530 = vpop.f32.mrb[0].mxu0
        %v1531 = vadd.f32 %v1467, %v1530
        %v1532 = vpop.f32.mrb[0].mxu0
        %v1533 = vpop.f32.mrb[0].mxu0
        %v1534 = vadd.f32 %v1467, %v1533
        %v1535 = vpop.f32.mrb[0].mxu0
        %1536 = vmatprep.mubr.bf16.mxu0 0
        %1537 = vmatmul.mubr.bf16.gmra.mrb[0].mxu0 %v1473
        %v1538 = vpop.f32.mrb[0].mxu0
        %v1539 = vadd.f32 %v1467, %v1538
        %v1540 = vpop.f32.mrb[0].mxu0
        %v1541 = vpop.f32.mrb[0].mxu0
        %v1542 = vadd.f32 %v1467, %v1541
        %v1543 = vpop.f32.mrb[0].mxu0
        %1544 = vmatprep.mubr.bf16.mxu0 0
        %1545 = vmatmul.mubr.bf16.gmra.mrb[0].mxu0 %v1476
        %v1546 = vpop.f32.mrb[0].mxu0
        %v1547 = vadd.f32 %v1467, %v1546
        %v1548 = vpop.f32.mrb[0].mxu0
        %v1549 = vpop.f32.mrb[0].mxu0
        %v1550 = vadd.f32 %v1467, %v1549
        %v1551 = vpop.f32.mrb[0].mxu0
        %1552 = vmatprep.mubr.bf16.mxu0 0
        %1553 = vmatmul.mubr.bf16.gmra.mrb[0].mxu0 %v1479
        %v1554 = vpop.f32.mrb[0].mxu0
        %v1555 = vadd.f32 %v1467, %v1554
        %v1556 = vpop.f32.mrb[0].mxu0
        %v1557 = vpop.f32.mrb[0].mxu0
        %v1558 = vadd.f32 %v1467, %v1557
        %v1559 = vpop.f32.mrb[0].mxu0
        %1560 = vmatprep.mubr.bf16.mxu0 0
        %1561 = vmatmul.mubr.bf16.gmra.mrb[0].mxu0 %v1482
        %v1562 = vpop.f32.mrb[0].mxu0
        %v1563 = vadd.f32 %v1467, %v1562
        %v1564 = vpop.f32.mrb[0].mxu0
        %v1565 = vpop.f32.mrb[0].mxu0
        %v1566 = vadd.f32 %v1467, %v1565
        %v1567 = vpop.f32.mrb[0].mxu0
        %1568 = vmatprep.mubr.bf16.mxu0 0
        %1569 = vmatmul.mubr.bf16.gmra.mrb[0].mxu0 %v1485
        %v1570 = vpop.f32.mrb[0].mxu0
        %v1571 = vadd.f32 %v1467, %v1570
        %v1572 = vpop.f32.mrb[0].mxu0
        %v1573 = vpop.f32.mrb[0].mxu0
        %v1574 = vadd.f32 %v1467, %v1573
        %v1575 = vpop.f32.mrb[0].mxu0
        %1576 = vmatprep.mubr.bf16.mxu0 0
        %1577 = vmatmul.mubr.bf16.gmra.mrb[0].mxu0 %v1488
        %v1578 = vpop.f32.mrb[0].mxu0
        %v1579 = vadd.f32 %v1467, %v1578
        %v1580 = vpop.f32.mrb[0].mxu0
        %v1581 = vpop.f32.mrb[0].mxu0
        %v1582 = vadd.f32 %v1467, %v1581
        %v1583 = vpop.f32.mrb[0].mxu0
        %1584 = vmatprep.mubr.bf16.mxu0 0
        %1585 = vmatmul.mubr.bf16.gmra.mrb[0].mxu0 %v1491
        %v1586 = vpop.f32.mrb[0].mxu0
        %v1587 = vadd.f32 %v1467, %v1586
        %v1588 = vpop.f32.mrb[0].mxu0
        %v1589 = vpop.f32.mrb[0].mxu0
        %v1590 = vadd.f32 %v1467, %v1589
        %v1591 = vpop.f32.mrb[0].mxu0
        %1592 = vdwg.mxu0
        %v1593 = vld [vmem:[%s389] sm:$0xff]
        %v1594 = vld [vmem:[%s389 + $0x8] sm:$0xff]
        %v1595 = vld [vmem:[%s389 + $0x10] sm:$0xff]
        %v1596 = vld [vmem:[%s389 + $0x18] sm:$0xff]
        %v1597 = vld [vmem:[%s389 + $0x20] sm:$0xff]
        %v1598 = vld [vmem:[%s389 + $0x28] sm:$0xff]
        %v1599 = vld [vmem:[%s389 + $0x30] sm:$0xff]
        %v1600 = vld [vmem:[%s389 + $0x38] sm:$0xff]
        %v1601 = vld [vmem:[%s389 + $0x40] sm:$0xff]
        %v1602 = vld [vmem:[%s389 + $0x48] sm:$0xff]
        %v1603 = vld [vmem:[%s389 + $0x50] sm:$0xff]
        %v1604 = vld [vmem:[%s389 + $0x58] sm:$0xff]
        %v1605 = vld [vmem:[%s389 + $0x60] sm:$0xff]
        %v1606 = vld [vmem:[%s389 + $0x68] sm:$0xff]
        %v1607 = vld [vmem:[%s389 + $0x70] sm:$0xff]
        %v1608 = vld [vmem:[%s389 + $0x78] sm:$0xff]
        %v1609 = vadd.f32 %v1531, %v1593
        %v1610 = vadd.f32 %v1534, %v1594
        %v1611 = vadd.f32 %v1539, %v1595
        %v1612 = vadd.f32 %v1542, %v1596
        %v1613 = vadd.f32 %v1547, %v1597
        %v1614 = vadd.f32 %v1550, %v1598
        %v1615 = vadd.f32 %v1555, %v1599
        %v1616 = vadd.f32 %v1558, %v1600
        %v1617 = vadd.f32 %v1563, %v1601
        %v1618 = vadd.f32 %v1566, %v1602
        %v1619 = vadd.f32 %v1571, %v1603
        %v1620 = vadd.f32 %v1574, %v1604
        %v1621 = vadd.f32 %v1579, %v1605
        %v1622 = vadd.f32 %v1582, %v1606
        %v1623 = vadd.f32 %v1587, %v1607
        %v1624 = vadd.f32 %v1590, %v1608
        %vm1625 = vcmask 31744
        %1626 = vst.msk [vmem:[%s399] sm:$0xff] %vm1625, %v1609
        %1627 = vst.msk [vmem:[%s399 + $0x8] sm:$0xff] %vm1625, %v1610
        %1628 = vst.msk [vmem:[%s399 + $0x10] sm:$0xff] %vm1625, %v1611
        %1629 = vst.msk [vmem:[%s399 + $0x18] sm:$0xff] %vm1625, %v1612
        %1630 = vst.msk [vmem:[%s399 + $0x20] sm:$0xff] %vm1625, %v1613
        %1631 = vst.msk [vmem:[%s399 + $0x28] sm:$0xff] %vm1625, %v1614
        %1632 = vst.msk [vmem:[%s399 + $0x30] sm:$0xff] %vm1625, %v1615
        %1633 = vst.msk [vmem:[%s399 + $0x38] sm:$0xff] %vm1625, %v1616
        %1634 = vst.msk [vmem:[%s399 + $0x40] sm:$0xff] %vm1625, %v1617
        %1635 = vst.msk [vmem:[%s399 + $0x48] sm:$0xff] %vm1625, %v1618
        %1636 = vst.msk [vmem:[%s399 + $0x50] sm:$0xff] %vm1625, %v1619
        %1637 = vst.msk [vmem:[%s399 + $0x58] sm:$0xff] %vm1625, %v1620
        %1638 = vst.msk [vmem:[%s399 + $0x60] sm:$0xff] %vm1625, %v1621
        %1639 = vst.msk [vmem:[%s399 + $0x68] sm:$0xff] %vm1625, %v1622
        %1640 = vst.msk [vmem:[%s399 + $0x70] sm:$0xff] %vm1625, %v1623
        %1641 = vst.msk [vmem:[%s399 + $0x78] sm:$0xff] %vm1625, %v1624
      $region52: #{tpu_custom_call.1} parent=43 // pred_fallthru
        _
      %s1642 = smul.u32 16, %s23
      %p1643 = scmp.lt.s32.totalorder %s22, 1
      %s1644 = scalar_select %p1643, %s22, 1
      %p1645 = scmp.lt.s32.totalorder %s1642, 31
      %s1646 = scalar_select %p1645, %s1642, 31
      %s1647 = smul.addr %s1644, 32
      %s1648 = sadd.s32 %s1646, %s1647
      %s1649 = smul.addr %s1648, 8
      %s1650 = scalar_lea.vmem %s6, %s1649
      // Predicated region
      $region53: #{tpu_custom_call.1} parent=43 // pred_check
        %p1651 = pneg %p210
      $region54: #{tpu_custom_call.1} parent=43 // pred_check_branch
        %1653 = sbr.rel (%p1651) target = $region56
      $region55: #{tpu_custom_call.1} parent=43 // pred_region
        %s1654 = smul.u32 16, %s23
      $region56: #{tpu_custom_call.1} parent=43 // pred_fallthru
        _
    $region44: #{tpu_custom_call.1} parent=5 // pred_fallthru
      _
    %p1655 = scmp.le.s32.totalorder 2, %s12
    // Predicated region
    $region57: #{tpu_custom_call.1} parent=5 // pred_check
      %p1656 = pneg %p1655
    $region58: #{tpu_custom_call.1} parent=5 // pred_check_branch
      %1658 = sbr.rel (%p1656) target = $region60
    $region59: #{tpu_custom_call.1} parent=5 // pred_region
      %s1659 = ssub.s32 %s12, 2
      // Predicated region
      $region61: #{tpu_custom_call.1} parent=59 // pred_check
        %p1660 = pneg %p216
      $region62: #{tpu_custom_call.1} parent=59 // pred_check_branch
        %1662 = sbr.rel (%p1660) target = $region64
      $region63: #{tpu_custom_call.1} parent=59 // pred_region
        %s1663 = smul.u32 16, %s26
        %p1664 = scmp.lt.s32.totalorder %s25, 1
        %s1665 = scalar_select %p1664, %s25, 1
        %p1666 = scmp.lt.s32.totalorder %s1663, 31
        %s1667 = scalar_select %p1666, %s1663, 31
        %s1668 = smul.addr %s1665, 32
        %s1669 = sadd.s32 %s1667, %s1668
        %s1670 = smul.addr %s1669, 8
        %s1671 = scalar_lea.vmem %s6, %s1670
      $region64: #{tpu_custom_call.1} parent=59 // pred_fallthru
        _
    $region60: #{tpu_custom_call.1} parent=5 // pred_fallthru
      _
  $region6: #{tpu_custom_call.1} parent=0 // loop_footer
    %s16 = sadd.s32 1, %s12
  $region7: #{tpu_custom_call.1} parent=0 // loop_footer_branch
    %11 = sbr.rel target = $region3
  $region8: #{tpu_custom_call.1} parent=0 // loop_exit
    _

</llo_original>
